<compile_context>
chip_gen: v5e
topology: v5e:2x2
jax: 0.10.0
libtpu: 0.0.40
codegen_flags: <defaults>
</compile_context>

<pallas_src>
import math

import jax
import jax.numpy as jnp
from jax.experimental import pallas as pl
from jax.experimental.pallas import tpu as pltpu

LANE = 128
MAX_K_BLOCK = 2048   # K tile for layer 1 when d_in is large (multiple of 128)


def _round_up(x, m):
    return ((x + m - 1) // m) * m


def mlp_kernel(x_ref, w1_ref, b1_ref, w2_ref, b2_ref,
               w3_ref, b3_ref, w4_ref, b4_ref, o_ref, acc_ref):
    """Fused 4-layer MLP. Grid = (batch tiles, K tiles of layer 1)."""
    k = pl.program_id(1)

    # Layer 1 partial products accumulate in an f32 VMEM scratch across K.
    @pl.when(k == 0)
    def _():
        acc_ref[...] = jnp.zeros_like(acc_ref)

    acc_ref[...] += jnp.dot(x_ref[...], w1_ref[...],
                            preferred_element_type=jnp.float32)

    # Remaining layers run once the layer-1 contraction is complete.
    @pl.when(k == pl.num_programs(1) - 1)
    def _():
        h = jnp.maximum(acc_ref[...] + b1_ref[...], 0.0).astype(jnp.bfloat16)
        h = jnp.dot(h, w2_ref[...], preferred_element_type=jnp.float32)
        h = jnp.maximum(h + b2_ref[...], 0.0).astype(jnp.bfloat16)
        h = jnp.dot(h, w3_ref[...], preferred_element_type=jnp.float32)
        h = jnp.maximum(h + b3_ref[...], 0.0).astype(jnp.bfloat16)
        out = jnp.dot(h, w4_ref[...], preferred_element_type=jnp.float32)
        o_ref[...] = (out + b4_ref[...]).astype(o_ref.dtype)


def mymodel_forward(x, params, *, tile_b=128):
    """x: (B, C, H, W) -> logits (B, output_size), matching MyModel.forward."""
    B = x.shape[0]
    x2d = x.reshape(B, -1)                        # torch.flatten(inputs, start_dim=1)
    d_in = x2d.shape[1]
    w1, b1, w2, b2, w3, b3, w4, b4 = params
    out_size = w4.shape[1]
    h1, h2, h3 = w1.shape[1], w2.shape[1], w3.shape[1]   # 512, 256, 128

    # ---- padding so every block is MXU / lane friendly ----------------------
    b_pad = _round_up(max(B, 1), tile_b)          # batch -> multiple of tile_b
    if d_in <= MAX_K_BLOCK:
        tk, d_pad = d_in, d_in                    # single K step (full-dim block)
    else:
        tk = MAX_K_BLOCK
        d_pad = _round_up(d_in, tk)
    out_pad = _round_up(out_size, LANE)           # lane-dense classifier output

    x2d = jnp.pad(x2d, ((0, b_pad - B), (0, d_pad - d_in))).astype(jnp.bfloat16)
    w1p = jnp.pad(w1, ((0, d_pad - d_in), (0, 0)))
    w4p = jnp.pad(w4, ((0, 0), (0, out_pad - out_size)))
    b4p = jnp.pad(b4, ((0, 0), (0, out_pad - out_size)))

    num_b = b_pad // tile_b
    num_k = d_pad // tk

    const = lambda shape: pl.BlockSpec(shape, lambda i, k: (0, 0))

    flops = 2 * b_pad * (d_pad * h1 + h1 * h2 + h2 * h3 + h3 * out_pad)
    bytes_accessed = (x2d.size * x2d.dtype.itemsize
                      + sum(int(a.size) * a.dtype.itemsize
                            for a in (w1p, b1, w2, b2, w3, b3, w4p, b4p))
                      + b_pad * out_pad * 4)

    out = pl.pallas_call(
        mlp_kernel,
        out_shape=jax.ShapeDtypeStruct((b_pad, out_pad), jnp.float32),
        grid_spec=pltpu.PrefetchScalarGridSpec(
            num_scalar_prefetch=0,
            grid=(num_b, num_k),                  # reduction (K) axis last
            in_specs=[
                pl.BlockSpec((tile_b, tk), lambda i, k: (i, k)),   # activations
                pl.BlockSpec((tk, h1), lambda i, k: (k, 0)),       # w1, K-tiled
                const(b1.shape),
                const(w2.shape), const(b2.shape),
                const(w3.shape), const(b3.shape),
                const(w4p.shape), const(b4p.shape),
            ],
            out_specs=pl.BlockSpec((tile_b, out_pad), lambda i, k: (i, 0)),
            scratch_shapes=[pltpu.VMEM((tile_b, h1), jnp.float32)],
        ),
        compiler_params=pltpu.CompilerParams(
            dimension_semantics=("parallel", "arbitrary"),
            vmem_limit_bytes=64 * 1024 * 1024,
        ),
        cost_estimate=pl.CostEstimate(flops=flops, transcendentals=0,
                                      bytes_accessed=bytes_accessed),
    )(x2d, w1p, b1, w2, b2, w3, b3, w4p, b4p)

    return out[:B, :out_size]


def init_params(key, input_size, output_size):
    """PyTorch-style uniform(+/-1/sqrt(fan_in)); weights stored bf16, biases f32."""
    dims = [(input_size, 512), (512, 256), (256, 128), (128, output_size)]
    params = []
    for fan_in, fan_out in dims:
        key, kw, kb = jax.random.split(key, 3)
        bound = 1.0 / math.sqrt(fan_in)
        w = jax.random.uniform(kw, (fan_in, fan_out), jnp.float32, -bound, bound)
        b = jax.random.uniform(kb, (1, fan_out), jnp.float32, -bound, bound)
        params += [w.astype(jnp.bfloat16), b]
    return tuple(params)


def reference_forward(x, params):
    """Pure-JAX reference mirroring the kernel's bf16-input / f32-accum math."""
    w1, b1, w2, b2, w3, b3, w4, b4 = params
    h = x.reshape(x.shape[0], -1).astype(jnp.bfloat16)
    h = jnp.maximum(jnp.dot(h, w1, preferred_element_type=jnp.float32) + b1, 0.0)
    h = jnp.maximum(jnp.dot(h.astype(jnp.bfloat16), w2,
                            preferred_element_type=jnp.float32) + b2, 0.0)
    h = jnp.maximum(jnp.dot(h.astype(jnp.bfloat16), w3,
                            preferred_element_type=jnp.float32) + b3, 0.0)
    return jnp.dot(h.astype(jnp.bfloat16), w4,
                   preferred_element_type=jnp.float32) + b4


if __name__ == "__main__":
    key = jax.random.PRNGKey(0)
    k_x, k_p = jax.random.split(key)

    # Small synthetic shapes: NCHW (200, 4, 8, 8) -> input_size = 256.
    # B=200 deliberately not a multiple of the 128-row tile so the pad-and-slice
    # path is exercised; padded batch (256) still yields two parallel grid steps.
    B, C, H, W = 200, 4, 8, 8
    input_size = C * H * W
    output_size = 10

    x = jax.random.normal(k_x, (B, C, H, W), jnp.float32)
    params = init_params(k_p, input_size, output_size)

    out = jax.block_until_ready(mymodel_forward(x, params))
    ref = reference_forward(x, params)

    assert out.shape == (B, output_size)
    err = jnp.max(jnp.abs(out - ref))
    assert jnp.allclose(out, ref, atol=1e-2, rtol=1e-2), (
        f"kernel mismatch vs reference: max abs err {err}")
    print("KERNEL_OK")
</pallas_src>

<mosaic_0001>
module attributes {stable_mosaic.version = 11 : i64} {
  func.func @mlp_kernel(%arg0: i32, %arg1: i32, %arg2: memref<128x256xbf16, #tpu.memory_space<vmem>>, %arg3: memref<256x512xbf16, #tpu.memory_space<vmem>>, %arg4: memref<1x512xf32, #tpu.memory_space<vmem>>, %arg5: memref<512x256xbf16, #tpu.memory_space<vmem>>, %arg6: memref<1x256xf32, #tpu.memory_space<vmem>>, %arg7: memref<256x128xbf16, #tpu.memory_space<vmem>>, %arg8: memref<1x128xf32, #tpu.memory_space<vmem>>, %arg9: memref<128x128xbf16, #tpu.memory_space<vmem>>, %arg10: memref<1x128xf32, #tpu.memory_space<vmem>>, %arg11: memref<128x128xf32, #tpu.memory_space<vmem>>, %arg12: memref<128x512xf32, #tpu.memory_space<vmem>>) attributes {dimension_semantics = [#tpu.dimension_semantics<parallel>, #tpu.dimension_semantics<arbitrary>], iteration_bounds = array<i64: 2, 1>, scalar_prefetch = 0 : i64, scratch_operands = 1 : i64, tpu.core_type = #tpu.core_type<tc>, window_params = [{transform_indices = @transform_0, window_bounds = array<i64: 128, 256>}, {transform_indices = @transform_1, window_bounds = array<i64: 256, 512>}, {pipeline_mode = #tpu.pipeline_mode<synchronous>, transform_indices = @transform_2, window_bounds = array<i64: 1, 512>}, {pipeline_mode = #tpu.pipeline_mode<synchronous>, transform_indices = @transform_3, window_bounds = array<i64: 512, 256>}, {pipeline_mode = #tpu.pipeline_mode<synchronous>, transform_indices = @transform_4, window_bounds = array<i64: 1, 256>}, {pipeline_mode = #tpu.pipeline_mode<synchronous>, transform_indices = @transform_5, window_bounds = array<i64: 256, 128>}, {pipeline_mode = #tpu.pipeline_mode<synchronous>, transform_indices = @transform_6, window_bounds = array<i64: 1, 128>}, {pipeline_mode = #tpu.pipeline_mode<synchronous>, transform_indices = @transform_7, window_bounds = array<i64: 128, 128>}, {pipeline_mode = #tpu.pipeline_mode<synchronous>, transform_indices = @transform_8, window_bounds = array<i64: 1, 128>}, {transform_indices = @transform_9, window_bounds = array<i64: 128, 128>}]} {
    %c0_i32 = arith.constant 0 : i32
    %0 = arith.cmpi eq, %arg1, %c0_i32 : i32
    %1 = arith.extui %0 : i1 to i32
    %c0_i32_0 = arith.constant 0 : i32
    %2 = arith.cmpi ne, %1, %c0_i32_0 : i32
    scf.if %2 {
      %cst_10 = arith.constant 0.000000e+00 : f32
      %12 = vector.broadcast %cst_10 : f32 to vector<128x512xf32>
      %c0_11 = arith.constant 0 : index
      %c0_12 = arith.constant 0 : index
      %13 = vector.load %arg12[%c0_11, %c0_12] : memref<128x512xf32, #tpu.memory_space<vmem>>, vector<128x512xf32>
      tpu.vector_store %arg12[%c0_11, %c0_12], %12 {strides = array<i32>} : memref<128x512xf32, #tpu.memory_space<vmem>>, vector<128x512xf32>,
    } else {
    }
    %c0 = arith.constant 0 : index
    %c0_1 = arith.constant 0 : index
    %3 = vector.load %arg12[%c0, %c0_1] : memref<128x512xf32, #tpu.memory_space<vmem>>, vector<128x512xf32>
    %c0_2 = arith.constant 0 : index
    %c0_3 = arith.constant 0 : index
    %4 = vector.load %arg2[%c0_2, %c0_3] : memref<128x256xbf16, #tpu.memory_space<vmem>>, vector<128x256xbf16>
    %c0_4 = arith.constant 0 : index
    %c0_5 = arith.constant 0 : index
    %5 = vector.load %arg3[%c0_4, %c0_5] : memref<256x512xbf16, #tpu.memory_space<vmem>>, vector<256x512xbf16>
    %cst = arith.constant dense<0.000000e+00> : vector<128x512xf32>
    %6 = tpu.matmul %4, %5, %cst {dimension_numbers = #tpu.dot_dimension_numbers<[1], [0], [0], [1], [0, 0, 1, 1], [], []>} : vector<128x256xbf16>, vector<256x512xbf16>, vector<128x512xf32> -> vector<128x512xf32>
    %7 = arith.addf %3, %6 : vector<128x512xf32>
    %c0_6 = arith.constant 0 : index
    %c0_7 = arith.constant 0 : index
    %8 = vector.load %arg12[%c0_6, %c0_7] : memref<128x512xf32, #tpu.memory_space<vmem>>, vector<128x512xf32>
    tpu.vector_store %arg12[%c0_6, %c0_7], %7 {strides = array<i32>} : memref<128x512xf32, #tpu.memory_space<vmem>>, vector<128x512xf32>,
    %c0_i32_8 = arith.constant 0 : i32
    %9 = arith.cmpi eq, %arg1, %c0_i32_8 : i32
    %10 = arith.extui %9 : i1 to i32
    %c0_i32_9 = arith.constant 0 : i32
    %11 = arith.cmpi ne, %10, %c0_i32_9 : i32
    scf.if %11 {
      %c0_10 = arith.constant 0 : index
      %c0_11 = arith.constant 0 : index
      %12 = vector.load %arg12[%c0_10, %c0_11] : memref<128x512xf32, #tpu.memory_space<vmem>>, vector<128x512xf32>
      %c0_12 = arith.constant 0 : index
      %c0_13 = arith.constant 0 : index
      %13 = vector.load %arg4[%c0_12, %c0_13] : memref<1x512xf32, #tpu.memory_space<vmem>>, vector<1x512xf32>
      %14 = vector.broadcast %13 : vector<1x512xf32> to vector<128x512xf32>
      %15 = arith.addf %12, %14 : vector<128x512xf32>
      %cst_14 = arith.constant 0.000000e+00 : f32
      %16 = vector.broadcast %cst_14 : f32 to vector<128x512xf32>
      %17 = arith.maximumf %15, %16 : vector<128x512xf32>
      %18 = arith.truncf %17 : vector<128x512xf32> to vector<128x512xbf16>
      %c0_15 = arith.constant 0 : index
      %c0_16 = arith.constant 0 : index
      %19 = vector.load %arg5[%c0_15, %c0_16] : memref<512x256xbf16, #tpu.memory_space<vmem>>, vector<512x256xbf16>
      %cst_17 = arith.constant dense<0.000000e+00> : vector<128x256xf32>
      %20 = tpu.matmul %18, %19, %cst_17 {dimension_numbers = #tpu.dot_dimension_numbers<[1], [0], [0], [1], [0, 0, 1, 1], [], []>} : vector<128x512xbf16>, vector<512x256xbf16>, vector<128x256xf32> -> vector<128x256xf32>
      %c0_18 = arith.constant 0 : index
      %c0_19 = arith.constant 0 : index
      %21 = vector.load %arg6[%c0_18, %c0_19] : memref<1x256xf32, #tpu.memory_space<vmem>>, vector<1x256xf32>
      %22 = vector.broadcast %21 : vector<1x256xf32> to vector<128x256xf32>
      %23 = arith.addf %20, %22 : vector<128x256xf32>
      %cst_20 = arith.constant 0.000000e+00 : f32
      %24 = vector.broadcast %cst_20 : f32 to vector<128x256xf32>
      %25 = arith.maximumf %23, %24 : vector<128x256xf32>
      %26 = arith.truncf %25 : vector<128x256xf32> to vector<128x256xbf16>
      %c0_21 = arith.constant 0 : index
      %c0_22 = arith.constant 0 : index
      %27 = vector.load %arg7[%c0_21, %c0_22] : memref<256x128xbf16, #tpu.memory_space<vmem>>, vector<256x128xbf16>
      %cst_23 = arith.constant dense<0.000000e+00> : vector<128x128xf32>
      %28 = tpu.matmul %26, %27, %cst_23 {dimension_numbers = #tpu.dot_dimension_numbers<[1], [0], [0], [1], [0, 0, 1, 1], [], []>} : vector<128x256xbf16>, vector<256x128xbf16>, vector<128x128xf32> -> vector<128x128xf32>
      %c0_24 = arith.constant 0 : index
      %c0_25 = arith.constant 0 : index
      %29 = vector.load %arg8[%c0_24, %c0_25] : memref<1x128xf32, #tpu.memory_space<vmem>>, vector<1x128xf32>
      %30 = vector.broadcast %29 : vector<1x128xf32> to vector<128x128xf32>
      %31 = arith.addf %28, %30 : vector<128x128xf32>
      %cst_26 = arith.constant 0.000000e+00 : f32
      %32 = vector.broadcast %cst_26 : f32 to vector<128x128xf32>
      %33 = arith.maximumf %31, %32 : vector<128x128xf32>
      %34 = arith.truncf %33 : vector<128x128xf32> to vector<128x128xbf16>
      %c0_27 = arith.constant 0 : index
      %c0_28 = arith.constant 0 : index
      %35 = vector.load %arg9[%c0_27, %c0_28] : memref<128x128xbf16, #tpu.memory_space<vmem>>, vector<128x128xbf16>
      %cst_29 = arith.constant dense<0.000000e+00> : vector<128x128xf32>
      %36 = tpu.matmul %34, %35, %cst_29 {dimension_numbers = #tpu.dot_dimension_numbers<[1], [0], [0], [1], [0, 0, 1, 1], [], []>} : vector<128x128xbf16>, vector<128x128xbf16>, vector<128x128xf32> -> vector<128x128xf32>
      %c0_30 = arith.constant 0 : index
      %c0_31 = arith.constant 0 : index
      %37 = vector.load %arg10[%c0_30, %c0_31] : memref<1x128xf32, #tpu.memory_space<vmem>>, vector<1x128xf32>
      %38 = vector.broadcast %37 : vector<1x128xf32> to vector<128x128xf32>
      %39 = arith.addf %36, %38 : vector<128x128xf32>
      %c0_32 = arith.constant 0 : index
      %c0_33 = arith.constant 0 : index
      %40 = vector.load %arg11[%c0_32, %c0_33] : memref<128x128xf32, #tpu.memory_space<vmem>>, vector<128x128xf32>
      tpu.vector_store %arg11[%c0_32, %c0_33], %39 {strides = array<i32>} : memref<128x128xf32, #tpu.memory_space<vmem>>, vector<128x128xf32>,
    } else {
    }
    return
  }
  func.func @transform_0(%arg0: i32, %arg1: i32) -> (i32, i32) {
    %c0_i32 = arith.constant 0 : i32
    return %arg0, %arg1 : i32, i32
  }
  func.func @transform_1(%arg0: i32, %arg1: i32) -> (i32, i32) {
    %c0_i32 = arith.constant 0 : i32
    %c0_i32_0 = arith.constant 0 : i32
    return %arg1, %c0_i32 : i32, i32
  }
  func.func @transform_2(%arg0: i32, %arg1: i32) -> (i32, i32) {
    %c0_i32 = arith.constant 0 : i32
    %c0_i32_0 = arith.constant 0 : i32
    %c0_i32_1 = arith.constant 0 : i32
    return %c0_i32, %c0_i32_0 : i32, i32
  }
  func.func @transform_3(%arg0: i32, %arg1: i32) -> (i32, i32) {
    %c0_i32 = arith.constant 0 : i32
    %c0_i32_0 = arith.constant 0 : i32
    %c0_i32_1 = arith.constant 0 : i32
    return %c0_i32, %c0_i32_0 : i32, i32
  }
  func.func @transform_4(%arg0: i32, %arg1: i32) -> (i32, i32) {
    %c0_i32 = arith.constant 0 : i32
    %c0_i32_0 = arith.constant 0 : i32
    %c0_i32_1 = arith.constant 0 : i32
    return %c0_i32, %c0_i32_0 : i32, i32
  }
  func.func @transform_5(%arg0: i32, %arg1: i32) -> (i32, i32) {
    %c0_i32 = arith.constant 0 : i32
    %c0_i32_0 = arith.constant 0 : i32
    %c0_i32_1 = arith.constant 0 : i32
    return %c0_i32, %c0_i32_0 : i32, i32
  }
  func.func @transform_6(%arg0: i32, %arg1: i32) -> (i32, i32) {
    %c0_i32 = arith.constant 0 : i32
    %c0_i32_0 = arith.constant 0 : i32
    %c0_i32_1 = arith.constant 0 : i32
    return %c0_i32, %c0_i32_0 : i32, i32
  }
  func.func @transform_7(%arg0: i32, %arg1: i32) -> (i32, i32) {
    %c0_i32 = arith.constant 0 : i32
    %c0_i32_0 = arith.constant 0 : i32
    %c0_i32_1 = arith.constant 0 : i32
    return %c0_i32, %c0_i32_0 : i32, i32
  }
  func.func @transform_8(%arg0: i32, %arg1: i32) -> (i32, i32) {
    %c0_i32 = arith.constant 0 : i32
    %c0_i32_0 = arith.constant 0 : i32
    %c0_i32_1 = arith.constant 0 : i32
    return %c0_i32, %c0_i32_0 : i32, i32
  }
  func.func @transform_9(%arg0: i32, %arg1: i32) -> (i32, i32) {
    %c0_i32 = arith.constant 0 : i32
    %c0_i32_0 = arith.constant 0 : i32
    return %arg0, %c0_i32 : i32, i32
  }
}

</mosaic_0001>

<llo_original>
// kernel: tpu_custom_call.1
$region0: #{tpu_custom_call.1}
  #allocation0 [shape = 'u32[]', space=smem, size = 0x4, offset = 0x4, fixed_abs, tag = 'smem constant byte address 0x4 - core index']
  #allocation1 [shape = 'u32[72,128]{1,0:T(1,128)}', space=vmem, size = 0x9000, scoped, tag = 'internal scratch']
  #allocation2 [shape = 'f32[128,512]{1,0:T(8,128)}', space=vmem, size = 0x40000, scoped, tag = 'scratch operand']
  %s0 = inlined_call_operand.hbm [shape: bf16[256,256], index: 0, kind: input, shape index: {}]
  %s1 = inlined_call_operand.hbm [shape: bf16[256,512], index: 1, kind: input, shape index: {}]
  %s2 = inlined_call_operand.hbm [shape: f32[1,512], index: 2, kind: input, shape index: {}]
  %s3 = inlined_call_operand.hbm [shape: bf16[512,256], index: 3, kind: input, shape index: {}]
  %s4 = inlined_call_operand.vmem [shape: f32[1,256], index: 4, kind: input, shape index: {}]
  %s5 = inlined_call_operand.hbm [shape: bf16[256,128], index: 5, kind: input, shape index: {}]
  %s6 = inlined_call_operand.vmem [shape: f32[1,128], index: 6, kind: input, shape index: {}]
  %s7 = inlined_call_operand.hbm [shape: bf16[128,128], index: 7, kind: input, shape index: {}]
  %s8 = inlined_call_operand.vmem [shape: f32[1,128], index: 8, kind: input, shape index: {}]
  %s9 = inlined_call_operand.hbm [shape: f32[256,128], index: 9, kind: output, shape index: {}]
  %s10 = sld [smem:[#allocation0]]
  $region101: #{tpu_custom_call.1} parent=0
    _
  %s12 = ssub.s32 1, %s10
  %s13 = scalar_select 0, %s12, %s10
  $region1: #{tpu_custom_call.1} parent=0
    #allocation3 [shape = 'u8[131072]{0}', space=vmem, size = 0x20000, scoped, tag = 'input window, operand 0']
    #allocation4 [shape = 's32[2]{0}', space=sflag, size = 0x8, scoped, tag = 'scoped memory for tpu_custom_call.1']
    #allocation5 [shape = 's32[2]{0}', space=sflag, size = 0x8, scoped, tag = 'scoped memory for tpu_custom_call.1']
    #allocation6 [shape = 'u8[262144]{0}', space=vmem, size = 0x40000, scoped, tag = 'input window, operand 1, single buffered']
    #allocation7 [shape = 's32[1]{0}', space=sflag, size = 0x4, scoped, tag = 'scoped memory for tpu_custom_call.1']
    #allocation8 [shape = 'u8[2048]{0}', space=vmem, size = 0x800, scoped, tag = 'input window, operand 2, single buffered']
    #allocation9 [shape = 'u8[262144]{0}', space=vmem, size = 0x40000, scoped, tag = 'input window, operand 3, single buffered']
    #allocation10 [shape = 's32[1]{0}', space=sflag, size = 0x4, scoped, tag = 'scoped memory for tpu_custom_call.1']
    #allocation11 [shape = 'u8[65536]{0}', space=vmem, size = 0x10000, scoped, tag = 'input window, operand 5, single buffered']
    #allocation12 [shape = 'u8[32768]{0}', space=vmem, size = 0x8000, scoped, tag = 'input window, operand 7, single buffered']
    #allocation13 [shape = 's32[1]{0}', space=sflag, size = 0x4, scoped, tag = 'scoped memory for tpu_custom_call.1']
    #allocation14 [shape = 'u8[131072]{0}', space=vmem, size = 0x20000, scoped, tag = 'output window, operand 0']
    %14 = vsyncpa [#allocation4], 0
    %s15 = scalar_lea.sflag [#allocation4], 1
    %16 = vsyncpa %s15, 0
    %17 = vsyncpa [#allocation7], 0
    %18 = vsyncpa [#allocation10], 0
    %19 = vsyncpa [#allocation13], 0
    %20 = vsyncpa [#allocation5], 0
    %s21 = scalar_lea.sflag [#allocation5], 1
    %22 = vsyncpa %s21, 0
    loop: start=0, step=1, limit=4
    $region2: #{tpu_custom_call.1} parent=1 // loop_pre_header
      _
    $region3: #{tpu_custom_call.1} parent=1 // loop_header
      %s24 = sphi 0, %s28
      %p25 = scmp.ge.s32.totalorder %s24, 4
      %s31 = sphi 0, %s43
      %s32 = sphi 0, %s39
      %s33 = sphi 0, %s31
      %s34 = sphi 0, %s32
      %s35 = sphi 0, %s33
      %s36 = sphi 0, %s34
      %s48 = sphi 0, %s50
      %s51 = sphi 0, %s48
      %s52 = sphi 0, %s51
      %s68 = sphi 0, %s52
      %s74 = sphi 0, %s76
      %s77 = sphi 0, %s74
      %s78 = sphi 0, %s77
      %s94 = sphi 0, %s78
      %s98 = sphi 0, %s98
      %s100 = sphi 0, %s98
      %s101 = sphi 0, %s100
      %s115 = sphi 0, %s101
      %s119 = sphi 0, %s119
      %s121 = sphi 0, %s119
      %s122 = sphi 0, %s121
      %s136 = sphi 0, %s122
      %s140 = sphi 0, %s140
      %s142 = sphi 0, %s140
      %s143 = sphi 0, %s142
      %s157 = sphi 0, %s143
      %s161 = sphi 0, %s161
      %s163 = sphi 0, %s161
      %s164 = sphi 0, %s163
      %s178 = sphi 0, %s164
      %s182 = sphi 0, %s182
      %s184 = sphi 0, %s182
      %s185 = sphi 0, %s184
      %s199 = sphi 0, %s185
      %s203 = sphi 0, %s203
      %s205 = sphi 0, %s203
      %s206 = sphi 0, %s205
      %s220 = sphi 0, %s206
      %s224 = sphi 0, %s224
      %s226 = sphi 0, %s224
      %s227 = sphi 0, %s226
      %s241 = sphi 0, %s227
      %s247 = sphi 0, %s249
      %s250 = sphi 0, %s247
      %s251 = sphi 0, %s250
      %s267 = sphi 0, %s251
    $region4: #{tpu_custom_call.1} parent=1 // loop_header_branch
      %27 = sbr.rel (%p25) target = $region8
    $region5: #{tpu_custom_call.1} parent=1 // loop_body
      %s29 = ssub.s32 %s24, 1
      %s30 = ssub.s32 %s24, 2
      %s37 = sadd.s32 1, %s32
      %p38 = scmp.ge.s32.totalorder %s37, 1
      %s39 = scalar_select %p38, 0, %s37
      %s40 = sadd.s32 1, %s31
      %s41 = scalar_select %p38, %s40, %s31
      %p42 = scmp.ge.s32.totalorder %s41, 2
      %s43 = scalar_select %p42, 0, %s41
      %s44 = ssub.s32 %s31, %s43
      %s45 = ssub.s32 %s32, %s39
      %s46 = sor.u32 %s44, %s45
      %p47 = scmp.eq.s32.totalorder %s46, 0
      %s49 = sadd.s32 %s48, 1
      %s50 = scalar_select %p47, %s48, %s49
      %p53 = pneg %p47
      %p54 = scmp.eq.s32.totalorder %s24, 1
      %p55 = por %p53, %p54
      %p56 = scmp.ne.s32.totalorder %s48, %s51
      %p57 = scmp.eq.s32.totalorder %s24, 0
      %p58 = por %p56, %p57
      %p59 = scmp.ne.s32.totalorder %s48, %s51
      %p60 = scmp.eq.s32.totalorder %s29, 1
      %p61 = por %p59, %p60
      %p62 = scmp.ne.s32.totalorder %s51, %s52
      %p63 = scmp.eq.s32.totalorder %s29, 0
      %p64 = por %p62, %p63
      %p65 = scmp.ne.s32.totalorder %s51, %s52
      %p66 = scmp.eq.s32.totalorder %s30, 1
      %p67 = por %p65, %p66
      %p69 = scmp.ne.s32.totalorder %s52, %s68
      %p70 = scmp.eq.s32.totalorder %s30, 0
      %p71 = por %p69, %p70
      %s72 = ssub.s32 %s32, %s39
      %p73 = scmp.eq.s32.totalorder %s72, 0
      %s75 = sadd.s32 %s74, 1
      %s76 = scalar_select %p73, %s74, %s75
      %p79 = pneg %p73
      %p80 = scmp.eq.s32.totalorder %s24, 1
      %p81 = por %p79, %p80
      %p82 = scmp.ne.s32.totalorder %s74, %s77
      %p83 = scmp.eq.s32.totalorder %s24, 0
      %p84 = por %p82, %p83
      %p85 = scmp.ne.s32.totalorder %s74, %s77
      %p86 = scmp.eq.s32.totalorder %s29, 1
      %p87 = por %p85, %p86
      %p88 = scmp.ne.s32.totalorder %s77, %s78
      %p89 = scmp.eq.s32.totalorder %s29, 0
      %p90 = por %p88, %p89
      %p91 = scmp.ne.s32.totalorder %s77, %s78
      %p92 = scmp.eq.s32.totalorder %s30, 1
      %p93 = por %p91, %p92
      %p95 = scmp.ne.s32.totalorder %s78, %s94
      %p96 = scmp.eq.s32.totalorder %s30, 0
      %p97 = por %p95, %p96
      %s99 = sadd.s32 %s98, 1
      %p102 = scmp.eq.s32.totalorder %s24, 1
      %p103 = scmp.ne.s32.totalorder %s98, %s100
      %p104 = scmp.eq.s32.totalorder %s24, 0
      %p105 = por %p103, %p104
      %p106 = scmp.ne.s32.totalorder %s98, %s100
      %p107 = scmp.eq.s32.totalorder %s29, 1
      %p108 = por %p106, %p107
      %p109 = scmp.ne.s32.totalorder %s100, %s101
      %p110 = scmp.eq.s32.totalorder %s29, 0
      %p111 = por %p109, %p110
      %p112 = scmp.ne.s32.totalorder %s100, %s101
      %p113 = scmp.eq.s32.totalorder %s30, 1
      %p114 = por %p112, %p113
      %p116 = scmp.ne.s32.totalorder %s101, %s115
      %p117 = scmp.eq.s32.totalorder %s30, 0
      %p118 = por %p116, %p117
      %s120 = sadd.s32 %s119, 1
      %p123 = scmp.eq.s32.totalorder %s24, 1
      %p124 = scmp.ne.s32.totalorder %s119, %s121
      %p125 = scmp.eq.s32.totalorder %s24, 0
      %p126 = por %p124, %p125
      %p127 = scmp.ne.s32.totalorder %s119, %s121
      %p128 = scmp.eq.s32.totalorder %s29, 1
      %p129 = por %p127, %p128
      %p130 = scmp.ne.s32.totalorder %s121, %s122
      %p131 = scmp.eq.s32.totalorder %s29, 0
      %p132 = por %p130, %p131
      %p133 = scmp.ne.s32.totalorder %s121, %s122
      %p134 = scmp.eq.s32.totalorder %s30, 1
      %p135 = por %p133, %p134
      %p137 = scmp.ne.s32.totalorder %s122, %s136
      %p138 = scmp.eq.s32.totalorder %s30, 0
      %p139 = por %p137, %p138
      %s141 = sadd.s32 %s140, 1
      %p144 = scmp.eq.s32.totalorder %s24, 1
      %p145 = scmp.ne.s32.totalorder %s140, %s142
      %p146 = scmp.eq.s32.totalorder %s24, 0
      %p147 = por %p145, %p146
      %p148 = scmp.ne.s32.totalorder %s140, %s142
      %p149 = scmp.eq.s32.totalorder %s29, 1
      %p150 = por %p148, %p149
      %p151 = scmp.ne.s32.totalorder %s142, %s143
      %p152 = scmp.eq.s32.totalorder %s29, 0
      %p153 = por %p151, %p152
      %p154 = scmp.ne.s32.totalorder %s142, %s143
      %p155 = scmp.eq.s32.totalorder %s30, 1
      %p156 = por %p154, %p155
      %p158 = scmp.ne.s32.totalorder %s143, %s157
      %p159 = scmp.eq.s32.totalorder %s30, 0
      %p160 = por %p158, %p159
      %s162 = sadd.s32 %s161, 1
      %p165 = scmp.eq.s32.totalorder %s24, 1
      %p166 = scmp.ne.s32.totalorder %s161, %s163
      %p167 = scmp.eq.s32.totalorder %s24, 0
      %p168 = por %p166, %p167
      %p169 = scmp.ne.s32.totalorder %s161, %s163
      %p170 = scmp.eq.s32.totalorder %s29, 1
      %p171 = por %p169, %p170
      %p172 = scmp.ne.s32.totalorder %s163, %s164
      %p173 = scmp.eq.s32.totalorder %s29, 0
      %p174 = por %p172, %p173
      %p175 = scmp.ne.s32.totalorder %s163, %s164
      %p176 = scmp.eq.s32.totalorder %s30, 1
      %p177 = por %p175, %p176
      %p179 = scmp.ne.s32.totalorder %s164, %s178
      %p180 = scmp.eq.s32.totalorder %s30, 0
      %p181 = por %p179, %p180
      %s183 = sadd.s32 %s182, 1
      %p186 = scmp.eq.s32.totalorder %s24, 1
      %p187 = scmp.ne.s32.totalorder %s182, %s184
      %p188 = scmp.eq.s32.totalorder %s24, 0
      %p189 = por %p187, %p188
      %p190 = scmp.ne.s32.totalorder %s182, %s184
      %p191 = scmp.eq.s32.totalorder %s29, 1
      %p192 = por %p190, %p191
      %p193 = scmp.ne.s32.totalorder %s184, %s185
      %p194 = scmp.eq.s32.totalorder %s29, 0
      %p195 = por %p193, %p194
      %p196 = scmp.ne.s32.totalorder %s184, %s185
      %p197 = scmp.eq.s32.totalorder %s30, 1
      %p198 = por %p196, %p197
      %p200 = scmp.ne.s32.totalorder %s185, %s199
      %p201 = scmp.eq.s32.totalorder %s30, 0
      %p202 = por %p200, %p201
      %s204 = sadd.s32 %s203, 1
      %p207 = scmp.eq.s32.totalorder %s24, 1
      %p208 = scmp.ne.s32.totalorder %s203, %s205
      %p209 = scmp.eq.s32.totalorder %s24, 0
      %p210 = por %p208, %p209
      %p211 = scmp.ne.s32.totalorder %s203, %s205
      %p212 = scmp.eq.s32.totalorder %s29, 1
      %p213 = por %p211, %p212
      %p214 = scmp.ne.s32.totalorder %s205, %s206
      %p215 = scmp.eq.s32.totalorder %s29, 0
      %p216 = por %p214, %p215
      %p217 = scmp.ne.s32.totalorder %s205, %s206
      %p218 = scmp.eq.s32.totalorder %s30, 1
      %p219 = por %p217, %p218
      %p221 = scmp.ne.s32.totalorder %s206, %s220
      %p222 = scmp.eq.s32.totalorder %s30, 0
      %p223 = por %p221, %p222
      %s225 = sadd.s32 %s224, 1
      %p228 = scmp.eq.s32.totalorder %s24, 1
      %p229 = scmp.ne.s32.totalorder %s224, %s226
      %p230 = scmp.eq.s32.totalorder %s24, 0
      %p231 = por %p229, %p230
      %p232 = scmp.ne.s32.totalorder %s224, %s226
      %p233 = scmp.eq.s32.totalorder %s29, 1
      %p234 = por %p232, %p233
      %p235 = scmp.ne.s32.totalorder %s226, %s227
      %p236 = scmp.eq.s32.totalorder %s29, 0
      %p237 = por %p235, %p236
      %p238 = scmp.ne.s32.totalorder %s226, %s227
      %p239 = scmp.eq.s32.totalorder %s30, 1
      %p240 = por %p238, %p239
      %p242 = scmp.ne.s32.totalorder %s227, %s241
      %p243 = scmp.eq.s32.totalorder %s30, 0
      %p244 = por %p242, %p243
      %s245 = ssub.s32 %s31, %s43
      %p246 = scmp.eq.s32.totalorder %s245, 0
      %s248 = sadd.s32 %s247, 1
      %s249 = scalar_select %p246, %s247, %s248
      %p252 = pneg %p246
      %p253 = scmp.eq.s32.totalorder %s24, 1
      %p254 = por %p252, %p253
      %p255 = scmp.ne.s32.totalorder %s247, %s250
      %p256 = scmp.eq.s32.totalorder %s24, 0
      %p257 = por %p255, %p256
      %p258 = scmp.ne.s32.totalorder %s247, %s250
      %p259 = scmp.eq.s32.totalorder %s29, 1
      %p260 = por %p258, %p259
      %p261 = scmp.ne.s32.totalorder %s250, %s251
      %p262 = scmp.eq.s32.totalorder %s29, 0
      %p263 = por %p261, %p262
      %p264 = scmp.ne.s32.totalorder %s250, %s251
      %p265 = scmp.eq.s32.totalorder %s30, 1
      %p266 = por %p264, %p265
      %p268 = scmp.ne.s32.totalorder %s251, %s267
      %p269 = scmp.eq.s32.totalorder %s30, 0
      %p270 = por %p268, %p269
      %p271 = scmp.le.s32.totalorder 1, %s24
      %p272 = scmp.lt.s32.totalorder %s24, 3
      %p273 = pnand %p271, %p272
      %p274 = pneg %p273
      // Predicated region
      $region9: #{tpu_custom_call.1} parent=5 // pred_check
        _
      $region10: #{tpu_custom_call.1} parent=5 // pred_check_branch
        %276 = sbr.rel (%p273) target = $region12
      $region11: #{tpu_custom_call.1} parent=5 // pred_region
        %s277 = ssub.s32 %s24, 1
        // Predicated region
        $region13: #{tpu_custom_call.1} parent=11 // pred_check
          %p278 = pneg %p90
        $region14: #{tpu_custom_call.1} parent=11 // pred_check_branch
          %280 = sbr.rel (%p278) target = $region16
        $region15: #{tpu_custom_call.1} parent=11 // pred_region
          %s281 = smul.u32 32, %s34
          %283 = vsyncadd [#allocation7], 0
          %s284 = smul.addr %s281, 4
          %s285 = smul.addr %s284, 4
          %s286 = scalar_lea.hbm %s1, %s285
          %s287 = sshll.u32 %s286, 4
          %s288 = int_to_ptr.hbm [resolvable:$true] %s287
          %s289 = sshll.u32 [#allocation6], 4
          %s290 = int_to_ptr.vmem [resolvable:$true] %s289
          %295 = dma.hbm_to_vmem [thread:$0]  %s288, 8192, %s290, [#allocation7], 256, 256, 16
        $region16: #{tpu_custom_call.1} parent=11 // pred_fallthru
          _
        // Predicated region
        $region17: #{tpu_custom_call.1} parent=11 // pred_check
          %p296 = pneg %p111
        $region18: #{tpu_custom_call.1} parent=11 // pred_check_branch
          %298 = sbr.rel (%p296) target = $region20
        $region19: #{tpu_custom_call.1} parent=11 // pred_region
          %300 = vsyncadd [#allocation7], 0
          %s302 = sshll.u32 %s2, 4
          %s303 = int_to_ptr.hbm [resolvable:$true] %s302
          %s304 = sshll.u32 [#allocation8], 4
          %s305 = int_to_ptr.vmem [resolvable:$true] %s304
          %307 = dma.hbm_to_vmem [thread:$0]  %s303, 64, %s305, [#allocation7]
        $region20: #{tpu_custom_call.1} parent=11 // pred_fallthru
          _
        // Predicated region
        $region21: #{tpu_custom_call.1} parent=11 // pred_check
          %p308 = pneg %p132
        $region22: #{tpu_custom_call.1} parent=11 // pred_check_branch
          %310 = sbr.rel (%p308) target = $region24
        $region23: #{tpu_custom_call.1} parent=11 // pred_region
          %312 = vsyncadd [#allocation10], 0
          %s313 = sshll.u32 %s3, 4
          %s314 = int_to_ptr.hbm [resolvable:$true] %s313
          %s315 = sshll.u32 [#allocation9], 4
          %s316 = int_to_ptr.vmem [resolvable:$true] %s315
          %321 = dma.hbm_to_vmem [thread:$0]  %s314, 8192, %s316, [#allocation10], 128, 128, 8
        $region24: #{tpu_custom_call.1} parent=11 // pred_fallthru
          _
        // Predicated region
        $region25: #{tpu_custom_call.1} parent=11 // pred_check
          %p322 = pneg %p153
        $region26: #{tpu_custom_call.1} parent=11 // pred_check_branch
          %324 = sbr.rel (%p322) target = $region28
        $region27: #{tpu_custom_call.1} parent=11 // pred_region
          _
        $region28: #{tpu_custom_call.1} parent=11 // pred_fallthru
          _
        // Predicated region
        $region29: #{tpu_custom_call.1} parent=11 // pred_check
          %p325 = pneg %p174
        $region30: #{tpu_custom_call.1} parent=11 // pred_check_branch
          %327 = sbr.rel (%p325) target = $region32
        $region31: #{tpu_custom_call.1} parent=11 // pred_region
          %329 = vsyncadd [#allocation10], 0
          %s330 = sshll.u32 %s5, 4
          %s331 = int_to_ptr.hbm [resolvable:$true] %s330
          %s332 = sshll.u32 [#allocation11], 4
          %s333 = int_to_ptr.vmem [resolvable:$true] %s332
          %338 = dma.hbm_to_vmem [thread:$0]  %s331, 2048, %s333, [#allocation10], 64, 64, 4
        $region32: #{tpu_custom_call.1} parent=11 // pred_fallthru
          _
        // Predicated region
        $region33: #{tpu_custom_call.1} parent=11 // pred_check
          %p339 = pneg %p195
        $region34: #{tpu_custom_call.1} parent=11 // pred_check_branch
          %341 = sbr.rel (%p339) target = $region36
        $region35: #{tpu_custom_call.1} parent=11 // pred_region
          _
        $region36: #{tpu_custom_call.1} parent=11 // pred_fallthru
          _
        // Predicated region
        $region37: #{tpu_custom_call.1} parent=11 // pred_check
          %p342 = pneg %p216
        $region38: #{tpu_custom_call.1} parent=11 // pred_check_branch
          %344 = sbr.rel (%p342) target = $region40
        $region39: #{tpu_custom_call.1} parent=11 // pred_region
          %346 = vsyncadd [#allocation13], 0
          %s347 = sshll.u32 %s7, 4
          %s348 = int_to_ptr.hbm [resolvable:$true] %s347
          %s349 = sshll.u32 [#allocation12], 4
          %s350 = int_to_ptr.vmem [resolvable:$true] %s349
          %355 = dma.hbm_to_vmem [thread:$0]  %s348, 1024, %s350, [#allocation13], 64, 64, 4
        $region40: #{tpu_custom_call.1} parent=11 // pred_fallthru
          _
        // Predicated region
        $region41: #{tpu_custom_call.1} parent=11 // pred_check
          %p356 = pneg %p237
        $region42: #{tpu_custom_call.1} parent=11 // pred_check_branch
          %358 = sbr.rel (%p356) target = $region44
        $region43: #{tpu_custom_call.1} parent=11 // pred_region
          _
        $region44: #{tpu_custom_call.1} parent=11 // pred_fallthru
          _
      $region12: #{tpu_custom_call.1} parent=5 // pred_fallthru
        _
      %p359 = scmp.lt.s32.totalorder %s24, 2
      // Predicated region
      $region45: #{tpu_custom_call.1} parent=5 // pred_check
        %p360 = pneg %p359
      $region46: #{tpu_custom_call.1} parent=5 // pred_check_branch
        %362 = sbr.rel (%p360) target = $region48
      $region47: #{tpu_custom_call.1} parent=5 // pred_region
        // Predicated region
        $region49: #{tpu_custom_call.1} parent=47 // pred_check
          %p363 = pneg %p58
        $region50: #{tpu_custom_call.1} parent=47 // pred_check_branch
          %365 = sbr.rel (%p363) target = $region52
        $region51: #{tpu_custom_call.1} parent=47 // pred_region
          %s366 = sand.u32 %s48, 1
          %s367 = scalar_lea.sflag [#allocation4], %s366
          %s368 = sand.u32 %s48, 1
          %s369 = smul.addr %s368, 128
          %s370 = scalar_lea.vmem [#allocation3], %s369
          %s371 = smul.u32 16, %s31
          %s372 = smul.u32 2, %s32
          %374 = vsyncadd %s367, 0
          %s375 = smul.addr %s371, 2
          %s376 = sadd.s32 %s372, %s375
          %s377 = smul.addr %s376, 4
          %s378 = scalar_lea.hbm %s0, %s377
          %s379 = sshll.u32 %s378, 4
          %s380 = int_to_ptr.hbm [resolvable:$true] %s379
          %s381 = sshll.u32 %s370, 4
          %s382 = int_to_ptr.vmem [resolvable:$true] %s381
          %387 = dma.hbm_to_vmem [thread:$0]  %s380, 2048, %s382, %s367, 128, 128, 8
        $region52: #{tpu_custom_call.1} parent=47 // pred_fallthru
          _
      $region48: #{tpu_custom_call.1} parent=5 // pred_fallthru
        _
      %p388 = scmp.le.s32.totalorder 1, %s24
      %p389 = scmp.lt.s32.totalorder %s24, 3
      %p390 = pnand %p388, %p389
      %p391 = pneg %p390
      // Predicated region
      $region53: #{tpu_custom_call.1} parent=5 // pred_check
        _
      $region54: #{tpu_custom_call.1} parent=5 // pred_check_branch
        %393 = sbr.rel (%p390) target = $region56
      $region55: #{tpu_custom_call.1} parent=5 // pred_region
        %s394 = ssub.s32 %s24, 1
        %s395 = sand.u32 %s51, 1
        %s396 = scalar_lea.sflag [#allocation4], %s395
        %s397 = sand.u32 %s51, 1
        %s398 = smul.addr %s397, 128
        %s399 = scalar_lea.vmem [#allocation3], %s398
        // Predicated region
        $region57: #{tpu_custom_call.1} parent=55 // pred_check
          %p400 = pneg %p64
        $region58: #{tpu_custom_call.1} parent=55 // pred_check_branch
          %402 = sbr.rel (%p400) target = $region60
        $region59: #{tpu_custom_call.1} parent=55 // pred_region
          %404 = dma.done %s396, 2048
        $region60: #{tpu_custom_call.1} parent=55 // pred_fallthru
          _
        // Predicated region
        $region61: #{tpu_custom_call.1} parent=55 // pred_check
          %p405 = pneg %p90
        $region62: #{tpu_custom_call.1} parent=55 // pred_check_branch
          %407 = sbr.rel (%p405) target = $region64
        $region63: #{tpu_custom_call.1} parent=55 // pred_region
          %409 = dma.done [#allocation7], 8192
        $region64: #{tpu_custom_call.1} parent=55 // pred_fallthru
          _
        // Predicated region
        $region65: #{tpu_custom_call.1} parent=55 // pred_check
          %p410 = pneg %p111
        $region66: #{tpu_custom_call.1} parent=55 // pred_check_branch
          %412 = sbr.rel (%p410) target = $region68
        $region67: #{tpu_custom_call.1} parent=55 // pred_region
          %414 = dma.done [#allocation7], 64
        $region68: #{tpu_custom_call.1} parent=55 // pred_fallthru
          _
        // Predicated region
        $region69: #{tpu_custom_call.1} parent=55 // pred_check
          %p415 = pneg %p132
        $region70: #{tpu_custom_call.1} parent=55 // pred_check_branch
          %417 = sbr.rel (%p415) target = $region72
        $region71: #{tpu_custom_call.1} parent=55 // pred_region
          %419 = dma.done [#allocation10], 8192
        $region72: #{tpu_custom_call.1} parent=55 // pred_fallthru
          _
        // Predicated region
        $region73: #{tpu_custom_call.1} parent=55 // pred_check
          %p420 = pneg %p174
        $region74: #{tpu_custom_call.1} parent=55 // pred_check_branch
          %422 = sbr.rel (%p420) target = $region76
        $region75: #{tpu_custom_call.1} parent=55 // pred_region
          %424 = dma.done [#allocation10], 2048
        $region76: #{tpu_custom_call.1} parent=55 // pred_fallthru
          _
        // Predicated region
        $region77: #{tpu_custom_call.1} parent=55 // pred_check
          %p425 = pneg %p216
        $region78: #{tpu_custom_call.1} parent=55 // pred_check_branch
          %427 = sbr.rel (%p425) target = $region80
        $region79: #{tpu_custom_call.1} parent=55 // pred_region
          %429 = dma.done [#allocation13], 1024
        $region80: #{tpu_custom_call.1} parent=55 // pred_fallthru
          _
        %s430 = sand.u32 %s51, 1
        %s431 = scalar_lea.sflag [#allocation4], %s430
        %s432 = sand.u32 %s51, 1
        %s433 = smul.addr %s432, 128
        %s434 = scalar_lea.vmem [#allocation3], %s433
        %p435 = pneg %p64
        %p436 = pneg %p61
        %p437 = pneg %p90
        %p438 = pneg %p87
        %p439 = pneg %p111
        %p440 = pneg %p108
        %p441 = pneg %p132
        %p442 = pneg %p129
        %p443 = pneg %p153
        %p444 = pneg %p150
        %p445 = pneg %p174
        %p446 = pneg %p171
        %p447 = pneg %p195
        %p448 = pneg %p192
        %p449 = pneg %p216
        %p450 = pneg %p213
        %p451 = pneg %p237
        %p452 = pneg %p234
        %p453 = pneg %p263
        %p454 = pneg %p260
        %s455 = sand.u32 %s250, 1
        %s456 = scalar_lea.sflag [#allocation5], %s455
        %s457 = sand.u32 %s250, 1
        %s458 = smul.addr %s457, 128
        %s459 = scalar_lea.vmem [#allocation14], %s458
        %s460 = smul.u32 16, %s33
        %s461 = smul.u32 2, %s34
        %s462 = smul.u32 32, %s34
        %s463 = smul.u32 16, %s33
        %p464 = scmp.eq.s32.totalorder %s34, 0
        // Predicated region
        $region81: #{tpu_custom_call.1} parent=55 // pred_check
          %p465 = pneg %p464
        $region82: #{tpu_custom_call.1} parent=55 // pred_check_branch
          %467 = sbr.rel (%p465) target = $region84
        $region83: #{tpu_custom_call.1} parent=55 // pred_region
          %468 = vst [vmem:[#allocation2] sm:$0xff] 0.0
          %469 = vst [vmem:[#allocation2 + $0x8] sm:$0xff] 0.0
          %470 = vst [vmem:[#allocation2 + $0x10] sm:$0xff] 0.0
          %471 = vst [vmem:[#allocation2 + $0x18] sm:$0xff] 0.0
          %472 = vst [vmem:[#allocation2 + $0x20] sm:$0xff] 0.0
          %473 = vst [vmem:[#allocation2 + $0x28] sm:$0xff] 0.0
          %474 = vst [vmem:[#allocation2 + $0x30] sm:$0xff] 0.0
          %475 = vst [vmem:[#allocation2 + $0x38] sm:$0xff] 0.0
          %476 = vst [vmem:[#allocation2 + $0x40] sm:$0xff] 0.0
          %477 = vst [vmem:[#allocation2 + $0x48] sm:$0xff] 0.0
          %478 = vst [vmem:[#allocation2 + $0x50] sm:$0xff] 0.0
          %479 = vst [vmem:[#allocation2 + $0x58] sm:$0xff] 0.0
          %480 = vst [vmem:[#allocation2 + $0x60] sm:$0xff] 0.0
          %481 = vst [vmem:[#allocation2 + $0x68] sm:$0xff] 0.0
          %482 = vst [vmem:[#allocation2 + $0x70] sm:$0xff] 0.0
          %483 = vst [vmem:[#allocation2 + $0x78] sm:$0xff] 0.0
          %484 = vst [vmem:[#allocation2 + $0x80] sm:$0xff] 0.0
          %485 = vst [vmem:[#allocation2 + $0x88] sm:$0xff] 0.0
          %486 = vst [vmem:[#allocation2 + $0x90] sm:$0xff] 0.0
          %487 = vst [vmem:[#allocation2 + $0x98] sm:$0xff] 0.0
          %488 = vst [vmem:[#allocation2 + $0xa0] sm:$0xff] 0.0
          %489 = vst [vmem:[#allocation2 + $0xa8] sm:$0xff] 0.0
          %490 = vst [vmem:[#allocation2 + $0xb0] sm:$0xff] 0.0
          %491 = vst [vmem:[#allocation2 + $0xb8] sm:$0xff] 0.0
          %492 = vst [vmem:[#allocation2 + $0xc0] sm:$0xff] 0.0
          %493 = vst [vmem:[#allocation2 + $0xc8] sm:$0xff] 0.0
          %494 = vst [vmem:[#allocation2 + $0xd0] sm:$0xff] 0.0
          %495 = vst [vmem:[#allocation2 + $0xd8] sm:$0xff] 0.0
          %496 = vst [vmem:[#allocation2 + $0xe0] sm:$0xff] 0.0
          %497 = vst [vmem:[#allocation2 + $0xe8] sm:$0xff] 0.0
          %498 = vst [vmem:[#allocation2 + $0xf0] sm:$0xff] 0.0
          %499 = vst [vmem:[#allocation2 + $0xf8] sm:$0xff] 0.0
          %500 = vst [vmem:[#allocation2 + $0x100] sm:$0xff] 0.0
          %501 = vst [vmem:[#allocation2 + $0x108] sm:$0xff] 0.0
          %502 = vst [vmem:[#allocation2 + $0x110] sm:$0xff] 0.0
          %503 = vst [vmem:[#allocation2 + $0x118] sm:$0xff] 0.0
          %504 = vst [vmem:[#allocation2 + $0x120] sm:$0xff] 0.0
          %505 = vst [vmem:[#allocation2 + $0x128] sm:$0xff] 0.0
          %506 = vst [vmem:[#allocation2 + $0x130] sm:$0xff] 0.0
          %507 = vst [vmem:[#allocation2 + $0x138] sm:$0xff] 0.0
          %508 = vst [vmem:[#allocation2 + $0x140] sm:$0xff] 0.0
          %509 = vst [vmem:[#allocation2 + $0x148] sm:$0xff] 0.0
          %510 = vst [vmem:[#allocation2 + $0x150] sm:$0xff] 0.0
          %511 = vst [vmem:[#allocation2 + $0x158] sm:$0xff] 0.0
          %512 = vst [vmem:[#allocation2 + $0x160] sm:$0xff] 0.0
          %513 = vst [vmem:[#allocation2 + $0x168] sm:$0xff] 0.0
          %514 = vst [vmem:[#allocation2 + $0x170] sm:$0xff] 0.0
          %515 = vst [vmem:[#allocation2 + $0x178] sm:$0xff] 0.0
          %516 = vst [vmem:[#allocation2 + $0x180] sm:$0xff] 0.0
          %517 = vst [vmem:[#allocation2 + $0x188] sm:$0xff] 0.0
          %518 = vst [vmem:[#allocation2 + $0x190] sm:$0xff] 0.0
          %519 = vst [vmem:[#allocation2 + $0x198] sm:$0xff] 0.0
          %520 = vst [vmem:[#allocation2 + $0x1a0] sm:$0xff] 0.0
          %521 = vst [vmem:[#allocation2 + $0x1a8] sm:$0xff] 0.0
          %522 = vst [vmem:[#allocation2 + $0x1b0] sm:$0xff] 0.0
          %523 = vst [vmem:[#allocation2 + $0x1b8] sm:$0xff] 0.0
          %524 = vst [vmem:[#allocation2 + $0x1c0] sm:$0xff] 0.0
          %525 = vst [vmem:[#allocation2 + $0x1c8] sm:$0xff] 0.0
          %526 = vst [vmem:[#allocation2 + $0x1d0] sm:$0xff] 0.0
          %527 = vst [vmem:[#allocation2 + $0x1d8] sm:$0xff] 0.0
          %528 = vst [vmem:[#allocation2 + $0x1e0] sm:$0xff] 0.0
          %529 = vst [vmem:[#allocation2 + $0x1e8] sm:$0xff] 0.0
          %530 = vst [vmem:[#allocation2 + $0x1f0] sm:$0xff] 0.0
          %531 = vst [vmem:[#allocation2 + $0x1f8] sm:$0xff] 0.0
        $region84: #{tpu_custom_call.1} parent=55 // pred_fallthru
          _
        %v532 = vld [vmem:[#allocation2] sm:$0xff]
        %v533 = vld [vmem:[#allocation2 + $0x8] sm:$0xff]
        %v534 = vld [vmem:[#allocation2 + $0x10] sm:$0xff]
        %v535 = vld [vmem:[#allocation2 + $0x18] sm:$0xff]
        %v536 = vld [vmem:[#allocation2 + $0x20] sm:$0xff]
        %v537 = vld [vmem:[#allocation2 + $0x28] sm:$0xff]
        %v538 = vld [vmem:[#allocation2 + $0x30] sm:$0xff]
        %v539 = vld [vmem:[#allocation2 + $0x38] sm:$0xff]
        %v540 = vld [vmem:[#allocation2 + $0x40] sm:$0xff]
        %v541 = vld [vmem:[#allocation2 + $0x48] sm:$0xff]
        %v542 = vld [vmem:[#allocation2 + $0x50] sm:$0xff]
        %v543 = vld [vmem:[#allocation2 + $0x58] sm:$0xff]
        %v544 = vld [vmem:[#allocation2 + $0x60] sm:$0xff]
        %v545 = vld [vmem:[#allocation2 + $0x68] sm:$0xff]
        %v546 = vld [vmem:[#allocation2 + $0x70] sm:$0xff]
        %v547 = vld [vmem:[#allocation2 + $0x78] sm:$0xff]
        %v548 = vld [vmem:[#allocation2 + $0x80] sm:$0xff]
        %v549 = vld [vmem:[#allocation2 + $0x88] sm:$0xff]
        %v550 = vld [vmem:[#allocation2 + $0x90] sm:$0xff]
        %v551 = vld [vmem:[#allocation2 + $0x98] sm:$0xff]
        %v552 = vld [vmem:[#allocation2 + $0xa0] sm:$0xff]
        %v553 = vld [vmem:[#allocation2 + $0xa8] sm:$0xff]
        %v554 = vld [vmem:[#allocation2 + $0xb0] sm:$0xff]
        %v555 = vld [vmem:[#allocation2 + $0xb8] sm:$0xff]
        %v556 = vld [vmem:[#allocation2 + $0xc0] sm:$0xff]
        %v557 = vld [vmem:[#allocation2 + $0xc8] sm:$0xff]
        %v558 = vld [vmem:[#allocation2 + $0xd0] sm:$0xff]
        %v559 = vld [vmem:[#allocation2 + $0xd8] sm:$0xff]
        %v560 = vld [vmem:[#allocation2 + $0xe0] sm:$0xff]
        %v561 = vld [vmem:[#allocation2 + $0xe8] sm:$0xff]
        %v562 = vld [vmem:[#allocation2 + $0xf0] sm:$0xff]
        %v563 = vld [vmem:[#allocation2 + $0xf8] sm:$0xff]
        %v564 = vld [vmem:[#allocation2 + $0x100] sm:$0xff]
        %v565 = vld [vmem:[#allocation2 + $0x108] sm:$0xff]
        %v566 = vld [vmem:[#allocation2 + $0x110] sm:$0xff]
        %v567 = vld [vmem:[#allocation2 + $0x118] sm:$0xff]
        %v568 = vld [vmem:[#allocation2 + $0x120] sm:$0xff]
        %v569 = vld [vmem:[#allocation2 + $0x128] sm:$0xff]
        %v570 = vld [vmem:[#allocation2 + $0x130] sm:$0xff]
        %v571 = vld [vmem:[#allocation2 + $0x138] sm:$0xff]
        %v572 = vld [vmem:[#allocation2 + $0x140] sm:$0xff]
        %v573 = vld [vmem:[#allocation2 + $0x148] sm:$0xff]
        %v574 = vld [vmem:[#allocation2 + $0x150] sm:$0xff]
        %v575 = vld [vmem:[#allocation2 + $0x158] sm:$0xff]
        %v576 = vld [vmem:[#allocation2 + $0x160] sm:$0xff]
        %v577 = vld [vmem:[#allocation2 + $0x168] sm:$0xff]
        %v578 = vld [vmem:[#allocation2 + $0x170] sm:$0xff]
        %v579 = vld [vmem:[#allocation2 + $0x178] sm:$0xff]
        %v580 = vld [vmem:[#allocation2 + $0x180] sm:$0xff]
        %v581 = vld [vmem:[#allocation2 + $0x188] sm:$0xff]
        %v582 = vld [vmem:[#allocation2 + $0x190] sm:$0xff]
        %v583 = vld [vmem:[#allocation2 + $0x198] sm:$0xff]
        %v584 = vld [vmem:[#allocation2 + $0x1a0] sm:$0xff]
        %v585 = vld [vmem:[#allocation2 + $0x1a8] sm:$0xff]
        %v586 = vld [vmem:[#allocation2 + $0x1b0] sm:$0xff]
        %v587 = vld [vmem:[#allocation2 + $0x1b8] sm:$0xff]
        %v588 = vld [vmem:[#allocation2 + $0x1c0] sm:$0xff]
        %v589 = vld [vmem:[#allocation2 + $0x1c8] sm:$0xff]
        %v590 = vld [vmem:[#allocation2 + $0x1d0] sm:$0xff]
        %v591 = vld [vmem:[#allocation2 + $0x1d8] sm:$0xff]
        %v592 = vld [vmem:[#allocation2 + $0x1e0] sm:$0xff]
        %v593 = vld [vmem:[#allocation2 + $0x1e8] sm:$0xff]
        %v594 = vld [vmem:[#allocation2 + $0x1f0] sm:$0xff]
        %v595 = vld [vmem:[#allocation2 + $0x1f8] sm:$0xff]
        %v596 = vld [vmem:[%s399] sm:$0xff]
        %v597 = vld [vmem:[%s399 + $0x8] sm:$0xff]
        %v598 = vld [vmem:[%s399 + $0x10] sm:$0xff]
        %v599 = vld [vmem:[%s399 + $0x18] sm:$0xff]
        %v600 = vld [vmem:[%s399 + $0x20] sm:$0xff]
        %v601 = vld [vmem:[%s399 + $0x28] sm:$0xff]
        %v602 = vld [vmem:[%s399 + $0x30] sm:$0xff]
        %v603 = vld [vmem:[%s399 + $0x38] sm:$0xff]
        %v604 = vld [vmem:[%s399 + $0x40] sm:$0xff]
        %v605 = vld [vmem:[%s399 + $0x48] sm:$0xff]
        %v606 = vld [vmem:[%s399 + $0x50] sm:$0xff]
        %v607 = vld [vmem:[%s399 + $0x58] sm:$0xff]
        %v608 = vld [vmem:[%s399 + $0x60] sm:$0xff]
        %v609 = vld [vmem:[%s399 + $0x68] sm:$0xff]
        %v610 = vld [vmem:[%s399 + $0x70] sm:$0xff]
        %v611 = vld [vmem:[%s399 + $0x78] sm:$0xff]
        %v612 = vld [vmem:[#allocation6] sm:$0xff]
        %v613 = vld [vmem:[#allocation6 + $0x8] sm:$0xff]
        %v614 = vld [vmem:[#allocation6 + $0x10] sm:$0xff]
        %v615 = vld [vmem:[#allocation6 + $0x18] sm:$0xff]
        %v616 = vld [vmem:[#allocation6 + $0x20] sm:$0xff]
        %v617 = vld [vmem:[#allocation6 + $0x28] sm:$0xff]
        %v618 = vld [vmem:[#allocation6 + $0x30] sm:$0xff]
        %v619 = vld [vmem:[#allocation6 + $0x38] sm:$0xff]
        %v620 = vld [vmem:[#allocation6 + $0x40] sm:$0xff]
        %v621 = vld [vmem:[#allocation6 + $0x48] sm:$0xff]
        %v622 = vld [vmem:[#allocation6 + $0x50] sm:$0xff]
        %v623 = vld [vmem:[#allocation6 + $0x58] sm:$0xff]
        %v624 = vld [vmem:[#allocation6 + $0x60] sm:$0xff]
        %v625 = vld [vmem:[#allocation6 + $0x68] sm:$0xff]
        %v626 = vld [vmem:[#allocation6 + $0x70] sm:$0xff]
        %v627 = vld [vmem:[#allocation6 + $0x78] sm:$0xff]
        %v628 = vld [vmem:[#allocation6 + $0x80] sm:$0xff]
        %v629 = vld [vmem:[#allocation6 + $0x88] sm:$0xff]
        %v630 = vld [vmem:[#allocation6 + $0x90] sm:$0xff]
        %v631 = vld [vmem:[#allocation6 + $0x98] sm:$0xff]
        %v632 = vld [vmem:[#allocation6 + $0xa0] sm:$0xff]
        %v633 = vld [vmem:[#allocation6 + $0xa8] sm:$0xff]
        %v634 = vld [vmem:[#allocation6 + $0xb0] sm:$0xff]
        %v635 = vld [vmem:[#allocation6 + $0xb8] sm:$0xff]
        %v636 = vld [vmem:[#allocation6 + $0xc0] sm:$0xff]
        %v637 = vld [vmem:[#allocation6 + $0xc8] sm:$0xff]
        %v638 = vld [vmem:[#allocation6 + $0xd0] sm:$0xff]
        %v639 = vld [vmem:[#allocation6 + $0xd8] sm:$0xff]
        %v640 = vld [vmem:[#allocation6 + $0xe0] sm:$0xff]
        %v641 = vld [vmem:[#allocation6 + $0xe8] sm:$0xff]
        %v642 = vld [vmem:[#allocation6 + $0xf0] sm:$0xff]
        %v643 = vld [vmem:[#allocation6 + $0xf8] sm:$0xff]
        %v644 = vld [vmem:[#allocation6 + $0x100] sm:$0xff]
        %v645 = vld [vmem:[#allocation6 + $0x108] sm:$0xff]
        %v646 = vld [vmem:[#allocation6 + $0x110] sm:$0xff]
        %v647 = vld [vmem:[#allocation6 + $0x118] sm:$0xff]
        %v648 = vld [vmem:[#allocation6 + $0x120] sm:$0xff]
        %v649 = vld [vmem:[#allocation6 + $0x128] sm:$0xff]
        %v650 = vld [vmem:[#allocation6 + $0x130] sm:$0xff]
        %v651 = vld [vmem:[#allocation6 + $0x138] sm:$0xff]
        %v652 = vld [vmem:[#allocation6 + $0x140] sm:$0xff]
        %v653 = vld [vmem:[#allocation6 + $0x148] sm:$0xff]
        %v654 = vld [vmem:[#allocation6 + $0x150] sm:$0xff]
        %v655 = vld [vmem:[#allocation6 + $0x158] sm:$0xff]
        %v656 = vld [vmem:[#allocation6 + $0x160] sm:$0xff]
        %v657 = vld [vmem:[#allocation6 + $0x168] sm:$0xff]
        %v658 = vld [vmem:[#allocation6 + $0x170] sm:$0xff]
        %v659 = vld [vmem:[#allocation6 + $0x178] sm:$0xff]
        %v660 = vld [vmem:[#allocation6 + $0x180] sm:$0xff]
        %v661 = vld [vmem:[#allocation6 + $0x188] sm:$0xff]
        %v662 = vld [vmem:[#allocation6 + $0x190] sm:$0xff]
        %v663 = vld [vmem:[#allocation6 + $0x198] sm:$0xff]
        %v664 = vld [vmem:[#allocation6 + $0x1a0] sm:$0xff]
        %v665 = vld [vmem:[#allocation6 + $0x1a8] sm:$0xff]
        %v666 = vld [vmem:[#allocation6 + $0x1b0] sm:$0xff]
        %v667 = vld [vmem:[#allocation6 + $0x1b8] sm:$0xff]
        %v668 = vld [vmem:[#allocation6 + $0x1c0] sm:$0xff]
        %v669 = vld [vmem:[#allocation6 + $0x1c8] sm:$0xff]
        %v670 = vld [vmem:[#allocation6 + $0x1d0] sm:$0xff]
        %v671 = vld [vmem:[#allocation6 + $0x1d8] sm:$0xff]
        %v672 = vld [vmem:[#allocation6 + $0x1e0] sm:$0xff]
        %v673 = vld [vmem:[#allocation6 + $0x1e8] sm:$0xff]
        %v674 = vld [vmem:[#allocation6 + $0x1f0] sm:$0xff]
        %v675 = vld [vmem:[#allocation6 + $0x1f8] sm:$0xff]
        %v692 = vunpack.c.l.b16 %v596
        %v693 = vunpack.c.h.b16 %v596
        %v694 = vunpack.c.l.b16 %v597
        %v695 = vunpack.c.h.b16 %v597
        %v696 = vunpack.c.l.b16 %v598
        %v697 = vunpack.c.h.b16 %v598
        %v698 = vunpack.c.l.b16 %v599
        %v699 = vunpack.c.h.b16 %v599
        %v700 = vunpack.c.l.b16 %v600
        %v701 = vunpack.c.h.b16 %v600
        %v702 = vunpack.c.l.b16 %v601
        %v703 = vunpack.c.h.b16 %v601
        %v704 = vunpack.c.l.b16 %v602
        %v705 = vunpack.c.h.b16 %v602
        %v706 = vunpack.c.l.b16 %v603
        %v707 = vunpack.c.h.b16 %v603
        %v708 = vunpack.c.l.b16 %v604
        %v709 = vunpack.c.h.b16 %v604
        %v710 = vunpack.c.l.b16 %v605
        %v711 = vunpack.c.h.b16 %v605
        %v712 = vunpack.c.l.b16 %v606
        %v713 = vunpack.c.h.b16 %v606
        %v714 = vunpack.c.l.b16 %v607
        %v715 = vunpack.c.h.b16 %v607
        %v716 = vunpack.c.l.b16 %v608
        %v717 = vunpack.c.h.b16 %v608
        %v718 = vunpack.c.l.b16 %v609
        %v719 = vunpack.c.h.b16 %v609
        %v720 = vunpack.c.l.b16 %v610
        %v721 = vunpack.c.h.b16 %v610
        %v722 = vunpack.c.l.b16 %v611
        %v723 = vunpack.c.h.b16 %v611
        %v724 = vpack.c.b16 %v694, %v692
        %v725 = vpack.c.b16 %v695, %v693
        %v726 = vpack.c.b16 %v698, %v696
        %v727 = vpack.c.b16 %v699, %v697
        %v728 = vpack.c.b16 %v702, %v700
        %v729 = vpack.c.b16 %v703, %v701
        %v730 = vpack.c.b16 %v706, %v704
        %v731 = vpack.c.b16 %v707, %v705
        %v732 = vpack.c.b16 %v710, %v708
        %v733 = vpack.c.b16 %v711, %v709
        %v734 = vpack.c.b16 %v714, %v712
        %v735 = vpack.c.b16 %v715, %v713
        %v736 = vpack.c.b16 %v718, %v716
        %v737 = vpack.c.b16 %v719, %v717
        %v738 = vpack.c.b16 %v722, %v720
        %v739 = vpack.c.b16 %v723, %v721
        %v820 = vunpack.c.l.b16 %v612
        %v821 = vunpack.c.h.b16 %v612
        %v822 = vunpack.c.l.b16 %v613
        %v823 = vunpack.c.h.b16 %v613
        %v824 = vunpack.c.l.b16 %v614
        %v825 = vunpack.c.h.b16 %v614
        %v826 = vunpack.c.l.b16 %v615
        %v827 = vunpack.c.h.b16 %v615
        %v828 = vunpack.c.l.b16 %v616
        %v829 = vunpack.c.h.b16 %v616
        %v830 = vunpack.c.l.b16 %v617
        %v831 = vunpack.c.h.b16 %v617
        %v832 = vunpack.c.l.b16 %v618
        %v833 = vunpack.c.h.b16 %v618
        %v834 = vunpack.c.l.b16 %v619
        %v835 = vunpack.c.h.b16 %v619
        %v836 = vunpack.c.l.b16 %v620
        %v837 = vunpack.c.h.b16 %v620
        %v838 = vunpack.c.l.b16 %v621
        %v839 = vunpack.c.h.b16 %v621
        %v840 = vunpack.c.l.b16 %v622
        %v841 = vunpack.c.h.b16 %v622
        %v842 = vunpack.c.l.b16 %v623
        %v843 = vunpack.c.h.b16 %v623
        %v844 = vunpack.c.l.b16 %v624
        %v845 = vunpack.c.h.b16 %v624
        %v846 = vunpack.c.l.b16 %v625
        %v847 = vunpack.c.h.b16 %v625
        %v848 = vunpack.c.l.b16 %v626
        %v849 = vunpack.c.h.b16 %v626
        %v850 = vunpack.c.l.b16 %v627
        %v851 = vunpack.c.h.b16 %v627
        %v852 = vunpack.c.l.b16 %v628
        %v853 = vunpack.c.h.b16 %v628
        %v854 = vunpack.c.l.b16 %v629
        %v855 = vunpack.c.h.b16 %v629
        %v856 = vunpack.c.l.b16 %v630
        %v857 = vunpack.c.h.b16 %v630
        %v858 = vunpack.c.l.b16 %v631
        %v859 = vunpack.c.h.b16 %v631
        %v860 = vunpack.c.l.b16 %v632
        %v861 = vunpack.c.h.b16 %v632
        %v862 = vunpack.c.l.b16 %v633
        %v863 = vunpack.c.h.b16 %v633
        %v864 = vunpack.c.l.b16 %v634
        %v865 = vunpack.c.h.b16 %v634
        %v866 = vunpack.c.l.b16 %v635
        %v867 = vunpack.c.h.b16 %v635
        %v868 = vunpack.c.l.b16 %v636
        %v869 = vunpack.c.h.b16 %v636
        %v870 = vunpack.c.l.b16 %v637
        %v871 = vunpack.c.h.b16 %v637
        %v872 = vunpack.c.l.b16 %v638
        %v873 = vunpack.c.h.b16 %v638
        %v874 = vunpack.c.l.b16 %v639
        %v875 = vunpack.c.h.b16 %v639
        %v876 = vunpack.c.l.b16 %v640
        %v877 = vunpack.c.h.b16 %v640
        %v878 = vunpack.c.l.b16 %v641
        %v879 = vunpack.c.h.b16 %v641
        %v880 = vunpack.c.l.b16 %v642
        %v881 = vunpack.c.h.b16 %v642
        %v882 = vunpack.c.l.b16 %v643
        %v883 = vunpack.c.h.b16 %v643
        %v884 = vunpack.c.l.b16 %v644
        %v885 = vunpack.c.h.b16 %v644
        %v886 = vunpack.c.l.b16 %v645
        %v887 = vunpack.c.h.b16 %v645
        %v888 = vunpack.c.l.b16 %v646
        %v889 = vunpack.c.h.b16 %v646
        %v890 = vunpack.c.l.b16 %v647
        %v891 = vunpack.c.h.b16 %v647
        %v892 = vunpack.c.l.b16 %v648
        %v893 = vunpack.c.h.b16 %v648
        %v894 = vunpack.c.l.b16 %v649
        %v895 = vunpack.c.h.b16 %v649
        %v896 = vunpack.c.l.b16 %v650
        %v897 = vunpack.c.h.b16 %v650
        %v898 = vunpack.c.l.b16 %v651
        %v899 = vunpack.c.h.b16 %v651
        %v900 = vunpack.c.l.b16 %v652
        %v901 = vunpack.c.h.b16 %v652
        %v902 = vunpack.c.l.b16 %v653
        %v903 = vunpack.c.h.b16 %v653
        %v904 = vunpack.c.l.b16 %v654
        %v905 = vunpack.c.h.b16 %v654
        %v906 = vunpack.c.l.b16 %v655
        %v907 = vunpack.c.h.b16 %v655
        %v908 = vunpack.c.l.b16 %v656
        %v909 = vunpack.c.h.b16 %v656
        %v910 = vunpack.c.l.b16 %v657
        %v911 = vunpack.c.h.b16 %v657
        %v912 = vunpack.c.l.b16 %v658
        %v913 = vunpack.c.h.b16 %v658
        %v914 = vunpack.c.l.b16 %v659
        %v915 = vunpack.c.h.b16 %v659
        %v916 = vunpack.c.l.b16 %v660
        %v917 = vunpack.c.h.b16 %v660
        %v918 = vunpack.c.l.b16 %v661
        %v919 = vunpack.c.h.b16 %v661
        %v920 = vunpack.c.l.b16 %v662
        %v921 = vunpack.c.h.b16 %v662
        %v922 = vunpack.c.l.b16 %v663
        %v923 = vunpack.c.h.b16 %v663
        %v924 = vunpack.c.l.b16 %v664
        %v925 = vunpack.c.h.b16 %v664
        %v926 = vunpack.c.l.b16 %v665
        %v927 = vunpack.c.h.b16 %v665
        %v928 = vunpack.c.l.b16 %v666
        %v929 = vunpack.c.h.b16 %v666
        %v930 = vunpack.c.l.b16 %v667
        %v931 = vunpack.c.h.b16 %v667
        %v932 = vunpack.c.l.b16 %v668
        %v933 = vunpack.c.h.b16 %v668
        %v934 = vunpack.c.l.b16 %v669
        %v935 = vunpack.c.h.b16 %v669
        %v936 = vunpack.c.l.b16 %v670
        %v937 = vunpack.c.h.b16 %v670
        %v938 = vunpack.c.l.b16 %v671
        %v939 = vunpack.c.h.b16 %v671
        %v940 = vunpack.c.l.b16 %v672
        %v941 = vunpack.c.h.b16 %v672
        %v942 = vunpack.c.l.b16 %v673
        %v943 = vunpack.c.h.b16 %v673
        %v944 = vunpack.c.l.b16 %v674
        %v945 = vunpack.c.h.b16 %v674
        %v946 = vunpack.c.l.b16 %v675
        %v947 = vunpack.c.h.b16 %v675
        %v948 = vpack.c.b16 %v824, %v820
        %v949 = vpack.c.b16 %v825, %v821
        %v950 = vpack.c.b16 %v826, %v822
        %v951 = vpack.c.b16 %v827, %v823
        %v952 = vpack.c.b16 %v832, %v828
        %v953 = vpack.c.b16 %v833, %v829
        %v954 = vpack.c.b16 %v834, %v830
        %v955 = vpack.c.b16 %v835, %v831
        %v956 = vpack.c.b16 %v840, %v836
        %v957 = vpack.c.b16 %v841, %v837
        %v958 = vpack.c.b16 %v842, %v838
        %v959 = vpack.c.b16 %v843, %v839
        %v960 = vpack.c.b16 %v848, %v844
        %v961 = vpack.c.b16 %v849, %v845
        %v962 = vpack.c.b16 %v850, %v846
        %v963 = vpack.c.b16 %v851, %v847
        %v964 = vpack.c.b16 %v856, %v852
        %v965 = vpack.c.b16 %v857, %v853
        %v966 = vpack.c.b16 %v858, %v854
        %v967 = vpack.c.b16 %v859, %v855
        %v968 = vpack.c.b16 %v864, %v860
        %v969 = vpack.c.b16 %v865, %v861
        %v970 = vpack.c.b16 %v866, %v862
        %v971 = vpack.c.b16 %v867, %v863
        %v972 = vpack.c.b16 %v872, %v868
        %v973 = vpack.c.b16 %v873, %v869
        %v974 = vpack.c.b16 %v874, %v870
        %v975 = vpack.c.b16 %v875, %v871
        %v976 = vpack.c.b16 %v880, %v876
        %v977 = vpack.c.b16 %v881, %v877
        %v978 = vpack.c.b16 %v882, %v878
        %v979 = vpack.c.b16 %v883, %v879
        %v980 = vpack.c.b16 %v888, %v884
        %v981 = vpack.c.b16 %v889, %v885
        %v982 = vpack.c.b16 %v890, %v886
        %v983 = vpack.c.b16 %v891, %v887
        %v984 = vpack.c.b16 %v896, %v892
        %v985 = vpack.c.b16 %v897, %v893
        %v986 = vpack.c.b16 %v898, %v894
        %v987 = vpack.c.b16 %v899, %v895
        %v988 = vpack.c.b16 %v904, %v900
        %v989 = vpack.c.b16 %v905, %v901
        %v990 = vpack.c.b16 %v906, %v902
        %v991 = vpack.c.b16 %v907, %v903
        %v992 = vpack.c.b16 %v912, %v908
        %v993 = vpack.c.b16 %v913, %v909
        %v994 = vpack.c.b16 %v914, %v910
        %v995 = vpack.c.b16 %v915, %v911
        %v996 = vpack.c.b16 %v920, %v916
        %v997 = vpack.c.b16 %v921, %v917
        %v998 = vpack.c.b16 %v922, %v918
        %v999 = vpack.c.b16 %v923, %v919
        %v1000 = vpack.c.b16 %v928, %v924
        %v1001 = vpack.c.b16 %v929, %v925
        %v1002 = vpack.c.b16 %v930, %v926
        %v1003 = vpack.c.b16 %v931, %v927
        %v1004 = vpack.c.b16 %v936, %v932
        %v1005 = vpack.c.b16 %v937, %v933
        %v1006 = vpack.c.b16 %v938, %v934
        %v1007 = vpack.c.b16 %v939, %v935
        %v1008 = vpack.c.b16 %v944, %v940
        %v1009 = vpack.c.b16 %v945, %v941
        %v1010 = vpack.c.b16 %v946, %v942
        %v1011 = vpack.c.b16 %v947, %v943
        %1076 = vmatpush.bf16.msra.mxu0 %v976
        %1077 = vmatpush.bf16.msra.mxu0 %v972
        %1078 = vmatpush.bf16.msra.mxu0 %v968
        %1079 = vmatpush.bf16.msra.mxu0 %v964
        %1080 = vmatpush.bf16.msra.mxu0 %v960
        %1081 = vmatpush.bf16.msra.mxu0 %v956
        %1082 = vmatpush.bf16.msra.mxu0 %v952
        %1083 = vmatpush.bf16.msra.mxu0 %v948
        %1084 = vmatmul.bf16.gmra.mxu0 %v724
        %v1085 = vpop.f32.mrf.mxu0
        %v1086 = vadd.f32 0.0, %v1085
        %v1087 = vpop.f32.mrf.mxu0
        %v1088 = vadd.f32 0.0, %v1087
        %1089 = vmatmul.bf16.gmra.mxu0 %v726
        %v1090 = vpop.f32.mrf.mxu0
        %v1091 = vadd.f32 0.0, %v1090
        %v1092 = vpop.f32.mrf.mxu0
        %v1093 = vadd.f32 0.0, %v1092
        %1094 = vmatmul.bf16.gmra.mxu0 %v728
        %v1095 = vpop.f32.mrf.mxu0
        %v1096 = vadd.f32 0.0, %v1095
        %v1097 = vpop.f32.mrf.mxu0
        %v1098 = vadd.f32 0.0, %v1097
        %1099 = vmatmul.bf16.gmra.mxu0 %v730
        %v1100 = vpop.f32.mrf.mxu0
        %v1101 = vadd.f32 0.0, %v1100
        %v1102 = vpop.f32.mrf.mxu0
        %v1103 = vadd.f32 0.0, %v1102
        %1104 = vmatmul.bf16.gmra.mxu0 %v732
        %v1105 = vpop.f32.mrf.mxu0
        %v1106 = vadd.f32 0.0, %v1105
        %v1107 = vpop.f32.mrf.mxu0
        %v1108 = vadd.f32 0.0, %v1107
        %1109 = vmatmul.bf16.gmra.mxu0 %v734
        %v1110 = vpop.f32.mrf.mxu0
        %v1111 = vadd.f32 0.0, %v1110
        %v1112 = vpop.f32.mrf.mxu0
        %v1113 = vadd.f32 0.0, %v1112
        %1114 = vmatmul.bf16.gmra.mxu0 %v736
        %v1115 = vpop.f32.mrf.mxu0
        %v1116 = vadd.f32 0.0, %v1115
        %v1117 = vpop.f32.mrf.mxu0
        %v1118 = vadd.f32 0.0, %v1117
        %1119 = vmatmul.bf16.gmra.mxu0 %v738
        %v1120 = vpop.f32.mrf.mxu0
        %v1121 = vadd.f32 0.0, %v1120
        %v1122 = vpop.f32.mrf.mxu0
        %v1123 = vadd.f32 0.0, %v1122
        %1124 = vdwg.mxu0
        %1125 = vmatpush.bf16.msra.mxu0 %v1008
        %1126 = vmatpush.bf16.msra.mxu0 %v1004
        %1127 = vmatpush.bf16.msra.mxu0 %v1000
        %1128 = vmatpush.bf16.msra.mxu0 %v996
        %1129 = vmatpush.bf16.msra.mxu0 %v992
        %1130 = vmatpush.bf16.msra.mxu0 %v988
        %1131 = vmatpush.bf16.msra.mxu0 %v984
        %1132 = vmatpush.bf16.msra.mxu0 %v980
        %1133 = vmatmul.bf16.gmra.mxu0 %v725
        %v1134 = vpop.f32.mrf.mxu0
        %v1135 = vadd.f32 %v1086, %v1134
        %v1136 = vpop.f32.mrf.mxu0
        %v1137 = vadd.f32 %v1088, %v1136
        %1138 = vmatmul.bf16.gmra.mxu0 %v727
        %v1139 = vpop.f32.mrf.mxu0
        %v1140 = vadd.f32 %v1091, %v1139
        %v1141 = vpop.f32.mrf.mxu0
        %v1142 = vadd.f32 %v1093, %v1141
        %1143 = vmatmul.bf16.gmra.mxu0 %v729
        %v1144 = vpop.f32.mrf.mxu0
        %v1145 = vadd.f32 %v1096, %v1144
        %v1146 = vpop.f32.mrf.mxu0
        %v1147 = vadd.f32 %v1098, %v1146
        %1148 = vmatmul.bf16.gmra.mxu0 %v731
        %v1149 = vpop.f32.mrf.mxu0
        %v1150 = vadd.f32 %v1101, %v1149
        %v1151 = vpop.f32.mrf.mxu0
        %v1152 = vadd.f32 %v1103, %v1151
        %1153 = vmatmul.bf16.gmra.mxu0 %v733
        %v1154 = vpop.f32.mrf.mxu0
        %v1155 = vadd.f32 %v1106, %v1154
        %v1156 = vpop.f32.mrf.mxu0
        %v1157 = vadd.f32 %v1108, %v1156
        %1158 = vmatmul.bf16.gmra.mxu0 %v735
        %v1159 = vpop.f32.mrf.mxu0
        %v1160 = vadd.f32 %v1111, %v1159
        %v1161 = vpop.f32.mrf.mxu0
        %v1162 = vadd.f32 %v1113, %v1161
        %1163 = vmatmul.bf16.gmra.mxu0 %v737
        %v1164 = vpop.f32.mrf.mxu0
        %v1165 = vadd.f32 %v1116, %v1164
        %v1166 = vpop.f32.mrf.mxu0
        %v1167 = vadd.f32 %v1118, %v1166
        %1168 = vmatmul.bf16.gmra.mxu0 %v739
        %v1169 = vpop.f32.mrf.mxu0
        %v1170 = vadd.f32 %v1121, %v1169
        %v1171 = vpop.f32.mrf.mxu0
        %v1172 = vadd.f32 %v1123, %v1171
        %1173 = vdwg.mxu0
        %1174 = vmatpush.bf16.msra.mxu0 %v977
        %1175 = vmatpush.bf16.msra.mxu0 %v973
        %1176 = vmatpush.bf16.msra.mxu0 %v969
        %1177 = vmatpush.bf16.msra.mxu0 %v965
        %1178 = vmatpush.bf16.msra.mxu0 %v961
        %1179 = vmatpush.bf16.msra.mxu0 %v957
        %1180 = vmatpush.bf16.msra.mxu0 %v953
        %1181 = vmatpush.bf16.msra.mxu0 %v949
        %1182 = vmatmul.bf16.gmra.mxu0 %v724
        %v1183 = vpop.f32.mrf.mxu0
        %v1184 = vadd.f32 0.0, %v1183
        %v1185 = vpop.f32.mrf.mxu0
        %v1186 = vadd.f32 0.0, %v1185
        %1187 = vmatmul.bf16.gmra.mxu0 %v726
        %v1188 = vpop.f32.mrf.mxu0
        %v1189 = vadd.f32 0.0, %v1188
        %v1190 = vpop.f32.mrf.mxu0
        %v1191 = vadd.f32 0.0, %v1190
        %1192 = vmatmul.bf16.gmra.mxu0 %v728
        %v1193 = vpop.f32.mrf.mxu0
        %v1194 = vadd.f32 0.0, %v1193
        %v1195 = vpop.f32.mrf.mxu0
        %v1196 = vadd.f32 0.0, %v1195
        %1197 = vmatmul.bf16.gmra.mxu0 %v730
        %v1198 = vpop.f32.mrf.mxu0
        %v1199 = vadd.f32 0.0, %v1198
        %v1200 = vpop.f32.mrf.mxu0
        %v1201 = vadd.f32 0.0, %v1200
        %1202 = vmatmul.bf16.gmra.mxu0 %v732
        %v1203 = vpop.f32.mrf.mxu0
        %v1204 = vadd.f32 0.0, %v1203
        %v1205 = vpop.f32.mrf.mxu0
        %v1206 = vadd.f32 0.0, %v1205
        %1207 = vmatmul.bf16.gmra.mxu0 %v734
        %v1208 = vpop.f32.mrf.mxu0
        %v1209 = vadd.f32 0.0, %v1208
        %v1210 = vpop.f32.mrf.mxu0
        %v1211 = vadd.f32 0.0, %v1210
        %1212 = vmatmul.bf16.gmra.mxu0 %v736
        %v1213 = vpop.f32.mrf.mxu0
        %v1214 = vadd.f32 0.0, %v1213
        %v1215 = vpop.f32.mrf.mxu0
        %v1216 = vadd.f32 0.0, %v1215
        %1217 = vmatmul.bf16.gmra.mxu0 %v738
        %v1218 = vpop.f32.mrf.mxu0
        %v1219 = vadd.f32 0.0, %v1218
        %v1220 = vpop.f32.mrf.mxu0
        %v1221 = vadd.f32 0.0, %v1220
        %1222 = vdwg.mxu0
        %1223 = vmatpush.bf16.msra.mxu0 %v1009
        %1224 = vmatpush.bf16.msra.mxu0 %v1005
        %1225 = vmatpush.bf16.msra.mxu0 %v1001
        %1226 = vmatpush.bf16.msra.mxu0 %v997
        %1227 = vmatpush.bf16.msra.mxu0 %v993
        %1228 = vmatpush.bf16.msra.mxu0 %v989
        %1229 = vmatpush.bf16.msra.mxu0 %v985
        %1230 = vmatpush.bf16.msra.mxu0 %v981
        %1231 = vmatmul.bf16.gmra.mxu0 %v725
        %v1232 = vpop.f32.mrf.mxu0
        %v1233 = vadd.f32 %v1184, %v1232
        %v1234 = vpop.f32.mrf.mxu0
        %v1235 = vadd.f32 %v1186, %v1234
        %1236 = vmatmul.bf16.gmra.mxu0 %v727
        %v1237 = vpop.f32.mrf.mxu0
        %v1238 = vadd.f32 %v1189, %v1237
        %v1239 = vpop.f32.mrf.mxu0
        %v1240 = vadd.f32 %v1191, %v1239
        %1241 = vmatmul.bf16.gmra.mxu0 %v729
        %v1242 = vpop.f32.mrf.mxu0
        %v1243 = vadd.f32 %v1194, %v1242
        %v1244 = vpop.f32.mrf.mxu0
        %v1245 = vadd.f32 %v1196, %v1244
        %1246 = vmatmul.bf16.gmra.mxu0 %v731
        %v1247 = vpop.f32.mrf.mxu0
        %v1248 = vadd.f32 %v1199, %v1247
        %v1249 = vpop.f32.mrf.mxu0
        %v1250 = vadd.f32 %v1201, %v1249
        %1251 = vmatmul.bf16.gmra.mxu0 %v733
        %v1252 = vpop.f32.mrf.mxu0
        %v1253 = vadd.f32 %v1204, %v1252
        %v1254 = vpop.f32.mrf.mxu0
        %v1255 = vadd.f32 %v1206, %v1254
        %1256 = vmatmul.bf16.gmra.mxu0 %v735
        %v1257 = vpop.f32.mrf.mxu0
        %v1258 = vadd.f32 %v1209, %v1257
        %v1259 = vpop.f32.mrf.mxu0
        %v1260 = vadd.f32 %v1211, %v1259
        %1261 = vmatmul.bf16.gmra.mxu0 %v737
        %v1262 = vpop.f32.mrf.mxu0
        %v1263 = vadd.f32 %v1214, %v1262
        %v1264 = vpop.f32.mrf.mxu0
        %v1265 = vadd.f32 %v1216, %v1264
        %1266 = vmatmul.bf16.gmra.mxu0 %v739
        %v1267 = vpop.f32.mrf.mxu0
        %v1268 = vadd.f32 %v1219, %v1267
        %v1269 = vpop.f32.mrf.mxu0
        %v1270 = vadd.f32 %v1221, %v1269
        %1271 = vdwg.mxu0
        %1272 = vmatpush.bf16.msra.mxu0 %v978
        %1273 = vmatpush.bf16.msra.mxu0 %v974
        %1274 = vmatpush.bf16.msra.mxu0 %v970
        %1275 = vmatpush.bf16.msra.mxu0 %v966
        %1276 = vmatpush.bf16.msra.mxu0 %v962
        %1277 = vmatpush.bf16.msra.mxu0 %v958
        %1278 = vmatpush.bf16.msra.mxu0 %v954
        %1279 = vmatpush.bf16.msra.mxu0 %v950
        %1280 = vmatmul.bf16.gmra.mxu0 %v724
        %v1281 = vpop.f32.mrf.mxu0
        %v1282 = vadd.f32 0.0, %v1281
        %v1283 = vpop.f32.mrf.mxu0
        %v1284 = vadd.f32 0.0, %v1283
        %1285 = vmatmul.bf16.gmra.mxu0 %v726
        %v1286 = vpop.f32.mrf.mxu0
        %v1287 = vadd.f32 0.0, %v1286
        %v1288 = vpop.f32.mrf.mxu0
        %v1289 = vadd.f32 0.0, %v1288
        %1290 = vmatmul.bf16.gmra.mxu0 %v728
        %v1291 = vpop.f32.mrf.mxu0
        %v1292 = vadd.f32 0.0, %v1291
        %v1293 = vpop.f32.mrf.mxu0
        %v1294 = vadd.f32 0.0, %v1293
        %1295 = vmatmul.bf16.gmra.mxu0 %v730
        %v1296 = vpop.f32.mrf.mxu0
        %v1297 = vadd.f32 0.0, %v1296
        %v1298 = vpop.f32.mrf.mxu0
        %v1299 = vadd.f32 0.0, %v1298
        %1300 = vmatmul.bf16.gmra.mxu0 %v732
        %v1301 = vpop.f32.mrf.mxu0
        %v1302 = vadd.f32 0.0, %v1301
        %v1303 = vpop.f32.mrf.mxu0
        %v1304 = vadd.f32 0.0, %v1303
        %1305 = vmatmul.bf16.gmra.mxu0 %v734
        %v1306 = vpop.f32.mrf.mxu0
        %v1307 = vadd.f32 0.0, %v1306
        %v1308 = vpop.f32.mrf.mxu0
        %v1309 = vadd.f32 0.0, %v1308
        %1310 = vmatmul.bf16.gmra.mxu0 %v736
        %v1311 = vpop.f32.mrf.mxu0
        %v1312 = vadd.f32 0.0, %v1311
        %v1313 = vpop.f32.mrf.mxu0
        %v1314 = vadd.f32 0.0, %v1313
        %1315 = vmatmul.bf16.gmra.mxu0 %v738
        %v1316 = vpop.f32.mrf.mxu0
        %v1317 = vadd.f32 0.0, %v1316
        %v1318 = vpop.f32.mrf.mxu0
        %v1319 = vadd.f32 0.0, %v1318
        %1320 = vdwg.mxu0
        %1321 = vmatpush.bf16.msra.mxu0 %v1010
        %1322 = vmatpush.bf16.msra.mxu0 %v1006
        %1323 = vmatpush.bf16.msra.mxu0 %v1002
        %1324 = vmatpush.bf16.msra.mxu0 %v998
        %1325 = vmatpush.bf16.msra.mxu0 %v994
        %1326 = vmatpush.bf16.msra.mxu0 %v990
        %1327 = vmatpush.bf16.msra.mxu0 %v986
        %1328 = vmatpush.bf16.msra.mxu0 %v982
        %1329 = vmatmul.bf16.gmra.mxu0 %v725
        %v1330 = vpop.f32.mrf.mxu0
        %v1331 = vadd.f32 %v1282, %v1330
        %v1332 = vpop.f32.mrf.mxu0
        %v1333 = vadd.f32 %v1284, %v1332
        %1334 = vmatmul.bf16.gmra.mxu0 %v727
        %v1335 = vpop.f32.mrf.mxu0
        %v1336 = vadd.f32 %v1287, %v1335
        %v1337 = vpop.f32.mrf.mxu0
        %v1338 = vadd.f32 %v1289, %v1337
        %1339 = vmatmul.bf16.gmra.mxu0 %v729
        %v1340 = vpop.f32.mrf.mxu0
        %v1341 = vadd.f32 %v1292, %v1340
        %v1342 = vpop.f32.mrf.mxu0
        %v1343 = vadd.f32 %v1294, %v1342
        %1344 = vmatmul.bf16.gmra.mxu0 %v731
        %v1345 = vpop.f32.mrf.mxu0
        %v1346 = vadd.f32 %v1297, %v1345
        %v1347 = vpop.f32.mrf.mxu0
        %v1348 = vadd.f32 %v1299, %v1347
        %1349 = vmatmul.bf16.gmra.mxu0 %v733
        %v1350 = vpop.f32.mrf.mxu0
        %v1351 = vadd.f32 %v1302, %v1350
        %v1352 = vpop.f32.mrf.mxu0
        %v1353 = vadd.f32 %v1304, %v1352
        %1354 = vmatmul.bf16.gmra.mxu0 %v735
        %v1355 = vpop.f32.mrf.mxu0
        %v1356 = vadd.f32 %v1307, %v1355
        %v1357 = vpop.f32.mrf.mxu0
        %v1358 = vadd.f32 %v1309, %v1357
        %1359 = vmatmul.bf16.gmra.mxu0 %v737
        %v1360 = vpop.f32.mrf.mxu0
        %v1361 = vadd.f32 %v1312, %v1360
        %v1362 = vpop.f32.mrf.mxu0
        %v1363 = vadd.f32 %v1314, %v1362
        %1364 = vmatmul.bf16.gmra.mxu0 %v739
        %v1365 = vpop.f32.mrf.mxu0
        %v1366 = vadd.f32 %v1317, %v1365
        %v1367 = vpop.f32.mrf.mxu0
        %v1368 = vadd.f32 %v1319, %v1367
        %1369 = vdwg.mxu0
        %1370 = vmatpush.bf16.msra.mxu0 %v979
        %1371 = vmatpush.bf16.msra.mxu0 %v975
        %1372 = vmatpush.bf16.msra.mxu0 %v971
        %1373 = vmatpush.bf16.msra.mxu0 %v967
        %1374 = vmatpush.bf16.msra.mxu0 %v963
        %1375 = vmatpush.bf16.msra.mxu0 %v959
        %1376 = vmatpush.bf16.msra.mxu0 %v955
        %1377 = vmatpush.bf16.msra.mxu0 %v951
        %1378 = vmatmul.bf16.gmra.mxu0 %v724
        %v1379 = vpop.f32.mrf.mxu0
        %v1380 = vadd.f32 0.0, %v1379
        %v1381 = vpop.f32.mrf.mxu0
        %v1382 = vadd.f32 0.0, %v1381
        %1383 = vmatmul.bf16.gmra.mxu0 %v726
        %v1384 = vpop.f32.mrf.mxu0
        %v1385 = vadd.f32 0.0, %v1384
        %v1386 = vpop.f32.mrf.mxu0
        %v1387 = vadd.f32 0.0, %v1386
        %1388 = vmatmul.bf16.gmra.mxu0 %v728
        %v1389 = vpop.f32.mrf.mxu0
        %v1390 = vadd.f32 0.0, %v1389
        %v1391 = vpop.f32.mrf.mxu0
        %v1392 = vadd.f32 0.0, %v1391
        %1393 = vmatmul.bf16.gmra.mxu0 %v730
        %v1394 = vpop.f32.mrf.mxu0
        %v1395 = vadd.f32 0.0, %v1394
        %v1396 = vpop.f32.mrf.mxu0
        %v1397 = vadd.f32 0.0, %v1396
        %1398 = vmatmul.bf16.gmra.mxu0 %v732
        %v1399 = vpop.f32.mrf.mxu0
        %v1400 = vadd.f32 0.0, %v1399
        %v1401 = vpop.f32.mrf.mxu0
        %v1402 = vadd.f32 0.0, %v1401
        %1403 = vmatmul.bf16.gmra.mxu0 %v734
        %v1404 = vpop.f32.mrf.mxu0
        %v1405 = vadd.f32 0.0, %v1404
        %v1406 = vpop.f32.mrf.mxu0
        %v1407 = vadd.f32 0.0, %v1406
        %1408 = vmatmul.bf16.gmra.mxu0 %v736
        %v1409 = vpop.f32.mrf.mxu0
        %v1410 = vadd.f32 0.0, %v1409
        %v1411 = vpop.f32.mrf.mxu0
        %v1412 = vadd.f32 0.0, %v1411
        %1413 = vmatmul.bf16.gmra.mxu0 %v738
        %v1414 = vpop.f32.mrf.mxu0
        %v1415 = vadd.f32 0.0, %v1414
        %v1416 = vpop.f32.mrf.mxu0
        %v1417 = vadd.f32 0.0, %v1416
        %1418 = vdwg.mxu0
        %1419 = vmatpush.bf16.msra.mxu0 %v1011
        %1420 = vmatpush.bf16.msra.mxu0 %v1007
        %1421 = vmatpush.bf16.msra.mxu0 %v1003
        %1422 = vmatpush.bf16.msra.mxu0 %v999
        %1423 = vmatpush.bf16.msra.mxu0 %v995
        %1424 = vmatpush.bf16.msra.mxu0 %v991
        %1425 = vmatpush.bf16.msra.mxu0 %v987
        %1426 = vmatpush.bf16.msra.mxu0 %v983
        %1427 = vmatmul.bf16.gmra.mxu0 %v725
        %v1428 = vpop.f32.mrf.mxu0
        %v1429 = vadd.f32 %v1380, %v1428
        %v1430 = vpop.f32.mrf.mxu0
        %v1431 = vadd.f32 %v1382, %v1430
        %1432 = vmatmul.bf16.gmra.mxu0 %v727
        %v1433 = vpop.f32.mrf.mxu0
        %v1434 = vadd.f32 %v1385, %v1433
        %v1435 = vpop.f32.mrf.mxu0
        %v1436 = vadd.f32 %v1387, %v1435
        %1437 = vmatmul.bf16.gmra.mxu0 %v729
        %v1438 = vpop.f32.mrf.mxu0
        %v1439 = vadd.f32 %v1390, %v1438
        %v1440 = vpop.f32.mrf.mxu0
        %v1441 = vadd.f32 %v1392, %v1440
        %1442 = vmatmul.bf16.gmra.mxu0 %v731
        %v1443 = vpop.f32.mrf.mxu0
        %v1444 = vadd.f32 %v1395, %v1443
        %v1445 = vpop.f32.mrf.mxu0
        %v1446 = vadd.f32 %v1397, %v1445
        %1447 = vmatmul.bf16.gmra.mxu0 %v733
        %v1448 = vpop.f32.mrf.mxu0
        %v1449 = vadd.f32 %v1400, %v1448
        %v1450 = vpop.f32.mrf.mxu0
        %v1451 = vadd.f32 %v1402, %v1450
        %1452 = vmatmul.bf16.gmra.mxu0 %v735
        %v1453 = vpop.f32.mrf.mxu0
        %v1454 = vadd.f32 %v1405, %v1453
        %v1455 = vpop.f32.mrf.mxu0
        %v1456 = vadd.f32 %v1407, %v1455
        %1457 = vmatmul.bf16.gmra.mxu0 %v737
        %v1458 = vpop.f32.mrf.mxu0
        %v1459 = vadd.f32 %v1410, %v1458
        %v1460 = vpop.f32.mrf.mxu0
        %v1461 = vadd.f32 %v1412, %v1460
        %1462 = vmatmul.bf16.gmra.mxu0 %v739
        %v1463 = vpop.f32.mrf.mxu0
        %v1464 = vadd.f32 %v1415, %v1463
        %v1465 = vpop.f32.mrf.mxu0
        %v1466 = vadd.f32 %v1417, %v1465
        %1467 = vdwg.mxu0
        %v1468 = vadd.f32 %v532, %v1135
        %v1469 = vadd.f32 %v533, %v1233
        %v1470 = vadd.f32 %v534, %v1331
        %v1471 = vadd.f32 %v535, %v1429
        %v1472 = vadd.f32 %v536, %v1137
        %v1473 = vadd.f32 %v537, %v1235
        %v1474 = vadd.f32 %v538, %v1333
        %v1475 = vadd.f32 %v539, %v1431
        %v1476 = vadd.f32 %v540, %v1140
        %v1477 = vadd.f32 %v541, %v1238
        %v1478 = vadd.f32 %v542, %v1336
        %v1479 = vadd.f32 %v543, %v1434
        %v1480 = vadd.f32 %v544, %v1142
        %v1481 = vadd.f32 %v545, %v1240
        %v1482 = vadd.f32 %v546, %v1338
        %v1483 = vadd.f32 %v547, %v1436
        %v1484 = vadd.f32 %v548, %v1145
        %v1485 = vadd.f32 %v549, %v1243
        %v1486 = vadd.f32 %v550, %v1341
        %v1487 = vadd.f32 %v551, %v1439
        %v1488 = vadd.f32 %v552, %v1147
        %v1489 = vadd.f32 %v553, %v1245
        %v1490 = vadd.f32 %v554, %v1343
        %v1491 = vadd.f32 %v555, %v1441
        %v1492 = vadd.f32 %v556, %v1150
        %v1493 = vadd.f32 %v557, %v1248
        %v1494 = vadd.f32 %v558, %v1346
        %v1495 = vadd.f32 %v559, %v1444
        %v1496 = vadd.f32 %v560, %v1152
        %v1497 = vadd.f32 %v561, %v1250
        %v1498 = vadd.f32 %v562, %v1348
        %v1499 = vadd.f32 %v563, %v1446
        %v1500 = vadd.f32 %v564, %v1155
        %v1501 = vadd.f32 %v565, %v1253
        %v1502 = vadd.f32 %v566, %v1351
        %v1503 = vadd.f32 %v567, %v1449
        %v1504 = vadd.f32 %v568, %v1157
        %v1505 = vadd.f32 %v569, %v1255
        %v1506 = vadd.f32 %v570, %v1353
        %v1507 = vadd.f32 %v571, %v1451
        %v1508 = vadd.f32 %v572, %v1160
        %v1509 = vadd.f32 %v573, %v1258
        %v1510 = vadd.f32 %v574, %v1356
        %v1511 = vadd.f32 %v575, %v1454
        %v1512 = vadd.f32 %v576, %v1162
        %v1513 = vadd.f32 %v577, %v1260
        %v1514 = vadd.f32 %v578, %v1358
        %v1515 = vadd.f32 %v579, %v1456
        %v1516 = vadd.f32 %v580, %v1165
        %v1517 = vadd.f32 %v581, %v1263
        %v1518 = vadd.f32 %v582, %v1361
        %v1519 = vadd.f32 %v583, %v1459
        %v1520 = vadd.f32 %v584, %v1167
        %v1521 = vadd.f32 %v585, %v1265
        %v1522 = vadd.f32 %v586, %v1363
        %v1523 = vadd.f32 %v587, %v1461
        %v1524 = vadd.f32 %v588, %v1170
        %v1525 = vadd.f32 %v589, %v1268
        %v1526 = vadd.f32 %v590, %v1366
        %v1527 = vadd.f32 %v591, %v1464
        %v1528 = vadd.f32 %v592, %v1172
        %v1529 = vadd.f32 %v593, %v1270
        %v1530 = vadd.f32 %v594, %v1368
        %v1531 = vadd.f32 %v595, %v1466
        %1532 = vst [vmem:[#allocation2] sm:$0xff] %v1468
        %1533 = vst [vmem:[#allocation2 + $0x8] sm:$0xff] %v1469
        %1534 = vst [vmem:[#allocation2 + $0x10] sm:$0xff] %v1470
        %1535 = vst [vmem:[#allocation2 + $0x18] sm:$0xff] %v1471
        %1536 = vst [vmem:[#allocation2 + $0x20] sm:$0xff] %v1472
        %1537 = vst [vmem:[#allocation2 + $0x28] sm:$0xff] %v1473
        %1538 = vst [vmem:[#allocation2 + $0x30] sm:$0xff] %v1474
        %1539 = vst [vmem:[#allocation2 + $0x38] sm:$0xff] %v1475
        %1540 = vst [vmem:[#allocation2 + $0x40] sm:$0xff] %v1476
        %1541 = vst [vmem:[#allocation2 + $0x48] sm:$0xff] %v1477
        %1542 = vst [vmem:[#allocation2 + $0x50] sm:$0xff] %v1478
        %1543 = vst [vmem:[#allocation2 + $0x58] sm:$0xff] %v1479
        %1544 = vst [vmem:[#allocation2 + $0x60] sm:$0xff] %v1480
        %1545 = vst [vmem:[#allocation2 + $0x68] sm:$0xff] %v1481
        %1546 = vst [vmem:[#allocation2 + $0x70] sm:$0xff] %v1482
        %1547 = vst [vmem:[#allocation2 + $0x78] sm:$0xff] %v1483
        %1548 = vst [vmem:[#allocation2 + $0x80] sm:$0xff] %v1484
        %1549 = vst [vmem:[#allocation2 + $0x88] sm:$0xff] %v1485
        %1550 = vst [vmem:[#allocation2 + $0x90] sm:$0xff] %v1486
        %1551 = vst [vmem:[#allocation2 + $0x98] sm:$0xff] %v1487
        %1552 = vst [vmem:[#allocation2 + $0xa0] sm:$0xff] %v1488
        %1553 = vst [vmem:[#allocation2 + $0xa8] sm:$0xff] %v1489
        %1554 = vst [vmem:[#allocation2 + $0xb0] sm:$0xff] %v1490
        %1555 = vst [vmem:[#allocation2 + $0xb8] sm:$0xff] %v1491
        %1556 = vst [vmem:[#allocation2 + $0xc0] sm:$0xff] %v1492
        %1557 = vst [vmem:[#allocation2 + $0xc8] sm:$0xff] %v1493
        %1558 = vst [vmem:[#allocation2 + $0xd0] sm:$0xff] %v1494
        %1559 = vst [vmem:[#allocation2 + $0xd8] sm:$0xff] %v1495
        %1560 = vst [vmem:[#allocation2 + $0xe0] sm:$0xff] %v1496
        %1561 = vst [vmem:[#allocation2 + $0xe8] sm:$0xff] %v1497
        %1562 = vst [vmem:[#allocation2 + $0xf0] sm:$0xff] %v1498
        %1563 = vst [vmem:[#allocation2 + $0xf8] sm:$0xff] %v1499
        %1564 = vst [vmem:[#allocation2 + $0x100] sm:$0xff] %v1500
        %1565 = vst [vmem:[#allocation2 + $0x108] sm:$0xff] %v1501
        %1566 = vst [vmem:[#allocation2 + $0x110] sm:$0xff] %v1502
        %1567 = vst [vmem:[#allocation2 + $0x118] sm:$0xff] %v1503
        %1568 = vst [vmem:[#allocation2 + $0x120] sm:$0xff] %v1504
        %1569 = vst [vmem:[#allocation2 + $0x128] sm:$0xff] %v1505
        %1570 = vst [vmem:[#allocation2 + $0x130] sm:$0xff] %v1506
        %1571 = vst [vmem:[#allocation2 + $0x138] sm:$0xff] %v1507
        %1572 = vst [vmem:[#allocation2 + $0x140] sm:$0xff] %v1508
        %1573 = vst [vmem:[#allocation2 + $0x148] sm:$0xff] %v1509
        %1574 = vst [vmem:[#allocation2 + $0x150] sm:$0xff] %v1510
        %1575 = vst [vmem:[#allocation2 + $0x158] sm:$0xff] %v1511
        %1576 = vst [vmem:[#allocation2 + $0x160] sm:$0xff] %v1512
        %1577 = vst [vmem:[#allocation2 + $0x168] sm:$0xff] %v1513
        %1578 = vst [vmem:[#allocation2 + $0x170] sm:$0xff] %v1514
        %1579 = vst [vmem:[#allocation2 + $0x178] sm:$0xff] %v1515
        %1580 = vst [vmem:[#allocation2 + $0x180] sm:$0xff] %v1516
        %1581 = vst [vmem:[#allocation2 + $0x188] sm:$0xff] %v1517
        %1582 = vst [vmem:[#allocation2 + $0x190] sm:$0xff] %v1518
        %1583 = vst [vmem:[#allocation2 + $0x198] sm:$0xff] %v1519
        %1584 = vst [vmem:[#allocation2 + $0x1a0] sm:$0xff] %v1520
        %1585 = vst [vmem:[#allocation2 + $0x1a8] sm:$0xff] %v1521
        %1586 = vst [vmem:[#allocation2 + $0x1b0] sm:$0xff] %v1522
        %1587 = vst [vmem:[#allocation2 + $0x1b8] sm:$0xff] %v1523
        %1588 = vst [vmem:[#allocation2 + $0x1c0] sm:$0xff] %v1524
        %1589 = vst [vmem:[#allocation2 + $0x1c8] sm:$0xff] %v1525
        %1590 = vst [vmem:[#allocation2 + $0x1d0] sm:$0xff] %v1526
        %1591 = vst [vmem:[#allocation2 + $0x1d8] sm:$0xff] %v1527
        %1592 = vst [vmem:[#allocation2 + $0x1e0] sm:$0xff] %v1528
        %1593 = vst [vmem:[#allocation2 + $0x1e8] sm:$0xff] %v1529
        %1594 = vst [vmem:[#allocation2 + $0x1f0] sm:$0xff] %v1530
        %1595 = vst [vmem:[#allocation2 + $0x1f8] sm:$0xff] %v1531
        // Predicated region
        $region85: #{tpu_custom_call.1} parent=55 // pred_check
          %p1596 = pneg %p464
        $region86: #{tpu_custom_call.1} parent=55 // pred_check_branch
          %1598 = sbr.rel (%p1596) target = $region88
        $region87: #{tpu_custom_call.1} parent=55 // pred_region
          %v1599 = vld [vmem:[#allocation2] sm:$0xff]
          %v1600 = vld [vmem:[#allocation2 + $0x8] sm:$0xff]
          %v1601 = vld [vmem:[#allocation2 + $0x10] sm:$0xff]
          %v1602 = vld [vmem:[#allocation2 + $0x18] sm:$0xff]
          %v1603 = vld [vmem:[#allocation2 + $0x20] sm:$0xff]
          %v1604 = vld [vmem:[#allocation2 + $0x28] sm:$0xff]
          %v1605 = vld [vmem:[#allocation2 + $0x30] sm:$0xff]
          %v1606 = vld [vmem:[#allocation2 + $0x38] sm:$0xff]
          %v1607 = vld [vmem:[#allocation2 + $0x40] sm:$0xff]
          %v1608 = vld [vmem:[#allocation2 + $0x48] sm:$0xff]
          %v1609 = vld [vmem:[#allocation2 + $0x50] sm:$0xff]
          %v1610 = vld [vmem:[#allocation2 + $0x58] sm:$0xff]
          %v1611 = vld [vmem:[#allocation2 + $0x60] sm:$0xff]
          %v1612 = vld [vmem:[#allocation2 + $0x68] sm:$0xff]
          %v1613 = vld [vmem:[#allocation2 + $0x70] sm:$0xff]
          %v1614 = vld [vmem:[#allocation2 + $0x78] sm:$0xff]
          %v1615 = vld [vmem:[#allocation2 + $0x80] sm:$0xff]
          %v1616 = vld [vmem:[#allocation2 + $0x88] sm:$0xff]
          %v1617 = vld [vmem:[#allocation2 + $0x90] sm:$0xff]
          %v1618 = vld [vmem:[#allocation2 + $0x98] sm:$0xff]
          %v1619 = vld [vmem:[#allocation2 + $0xa0] sm:$0xff]
          %v1620 = vld [vmem:[#allocation2 + $0xa8] sm:$0xff]
          %v1621 = vld [vmem:[#allocation2 + $0xb0] sm:$0xff]
          %v1622 = vld [vmem:[#allocation2 + $0xb8] sm:$0xff]
          %v1623 = vld [vmem:[#allocation2 + $0xc0] sm:$0xff]
          %v1624 = vld [vmem:[#allocation2 + $0xc8] sm:$0xff]
          %v1625 = vld [vmem:[#allocation2 + $0xd0] sm:$0xff]
          %v1626 = vld [vmem:[#allocation2 + $0xd8] sm:$0xff]
          %v1627 = vld [vmem:[#allocation2 + $0xe0] sm:$0xff]
          %v1628 = vld [vmem:[#allocation2 + $0xe8] sm:$0xff]
          %v1629 = vld [vmem:[#allocation2 + $0xf0] sm:$0xff]
          %v1630 = vld [vmem:[#allocation2 + $0xf8] sm:$0xff]
          %v1631 = vld [vmem:[#allocation2 + $0x100] sm:$0xff]
          %v1632 = vld [vmem:[#allocation2 + $0x108] sm:$0xff]
          %v1633 = vld [vmem:[#allocation2 + $0x110] sm:$0xff]
          %v1634 = vld [vmem:[#allocation2 + $0x118] sm:$0xff]
          %v1635 = vld [vmem:[#allocation2 + $0x120] sm:$0xff]
          %v1636 = vld [vmem:[#allocation2 + $0x128] sm:$0xff]
          %v1637 = vld [vmem:[#allocation2 + $0x130] sm:$0xff]
          %v1638 = vld [vmem:[#allocation2 + $0x138] sm:$0xff]
          %v1639 = vld [vmem:[#allocation2 + $0x140] sm:$0xff]
          %v1640 = vld [vmem:[#allocation2 + $0x148] sm:$0xff]
          %v1641 = vld [vmem:[#allocation2 + $0x150] sm:$0xff]
          %v1642 = vld [vmem:[#allocation2 + $0x158] sm:$0xff]
          %v1643 = vld [vmem:[#allocation2 + $0x160] sm:$0xff]
          %v1644 = vld [vmem:[#allocation2 + $0x168] sm:$0xff]
          %v1645 = vld [vmem:[#allocation2 + $0x170] sm:$0xff]
          %v1646 = vld [vmem:[#allocation2 + $0x178] sm:$0xff]
          %v1647 = vld [vmem:[#allocation2 + $0x180] sm:$0xff]
          %v1648 = vld [vmem:[#allocation2 + $0x188] sm:$0xff]
          %v1649 = vld [vmem:[#allocation2 + $0x190] sm:$0xff]
          %v1650 = vld [vmem:[#allocation2 + $0x198] sm:$0xff]
          %v1651 = vld [vmem:[#allocation2 + $0x1a0] sm:$0xff]
          %v1652 = vld [vmem:[#allocation2 + $0x1a8] sm:$0xff]
          %v1653 = vld [vmem:[#allocation2 + $0x1b0] sm:$0xff]
          %v1654 = vld [vmem:[#allocation2 + $0x1b8] sm:$0xff]
          %v1655 = vld [vmem:[#allocation2 + $0x1c0] sm:$0xff]
          %v1656 = vld [vmem:[#allocation2 + $0x1c8] sm:$0xff]
          %v1657 = vld [vmem:[#allocation2 + $0x1d0] sm:$0xff]
          %v1658 = vld [vmem:[#allocation2 + $0x1d8] sm:$0xff]
          %v1659 = vld [vmem:[#allocation2 + $0x1e0] sm:$0xff]
          %v1660 = vld [vmem:[#allocation2 + $0x1e8] sm:$0xff]
          %v1661 = vld [vmem:[#allocation2 + $0x1f0] sm:$0xff]
          %v1662 = vld [vmem:[#allocation2 + $0x1f8] sm:$0xff]
          %v1663 = vld [vmem:[#allocation8] sm:$0xf]
          %v1665 = vperm.slane %v1663, 0
          %v1666 = vperm.slane %v1663, 1
          %v1667 = vperm.slane %v1663, 2
          %v1668 = vperm.slane %v1663, 3
          %v1673 = vadd.f32 %v1599, %v1665
          %v1674 = vadd.f32 %v1600, %v1666
          %v1675 = vadd.f32 %v1601, %v1667
          %v1676 = vadd.f32 %v1602, %v1668
          %v1677 = vadd.f32 %v1603, %v1665
          %v1678 = vadd.f32 %v1604, %v1666
          %v1679 = vadd.f32 %v1605, %v1667
          %v1680 = vadd.f32 %v1606, %v1668
          %v1681 = vadd.f32 %v1607, %v1665
          %v1682 = vadd.f32 %v1608, %v1666
          %v1683 = vadd.f32 %v1609, %v1667
          %v1684 = vadd.f32 %v1610, %v1668
          %v1685 = vadd.f32 %v1611, %v1665
          %v1686 = vadd.f32 %v1612, %v1666
          %v1687 = vadd.f32 %v1613, %v1667
          %v1688 = vadd.f32 %v1614, %v1668
          %v1689 = vadd.f32 %v1615, %v1665
          %v1690 = vadd.f32 %v1616, %v1666
          %v1691 = vadd.f32 %v1617, %v1667
          %v1692 = vadd.f32 %v1618, %v1668
          %v1693 = vadd.f32 %v1619, %v1665
          %v1694 = vadd.f32 %v1620, %v1666
          %v1695 = vadd.f32 %v1621, %v1667
          %v1696 = vadd.f32 %v1622, %v1668
          %v1697 = vadd.f32 %v1623, %v1665
          %v1698 = vadd.f32 %v1624, %v1666
          %v1699 = vadd.f32 %v1625, %v1667
          %v1700 = vadd.f32 %v1626, %v1668
          %v1701 = vadd.f32 %v1627, %v1665
          %v1702 = vadd.f32 %v1628, %v1666
          %v1703 = vadd.f32 %v1629, %v1667
          %v1704 = vadd.f32 %v1630, %v1668
          %v1705 = vadd.f32 %v1631, %v1665
          %v1706 = vadd.f32 %v1632, %v1666
          %v1707 = vadd.f32 %v1633, %v1667
          %v1708 = vadd.f32 %v1634, %v1668
          %v1709 = vadd.f32 %v1635, %v1665
          %v1710 = vadd.f32 %v1636, %v1666
          %v1711 = vadd.f32 %v1637, %v1667
          %v1712 = vadd.f32 %v1638, %v1668
          %v1713 = vadd.f32 %v1639, %v1665
          %v1714 = vadd.f32 %v1640, %v1666
          %v1715 = vadd.f32 %v1641, %v1667
          %v1716 = vadd.f32 %v1642, %v1668
          %v1717 = vadd.f32 %v1643, %v1665
          %v1718 = vadd.f32 %v1644, %v1666
          %v1719 = vadd.f32 %v1645, %v1667
          %v1720 = vadd.f32 %v1646, %v1668
          %v1721 = vadd.f32 %v1647, %v1665
          %v1722 = vadd.f32 %v1648, %v1666
          %v1723 = vadd.f32 %v1649, %v1667
          %v1724 = vadd.f32 %v1650, %v1668
          %v1725 = vadd.f32 %v1651, %v1665
          %v1726 = vadd.f32 %v1652, %v1666
          %v1727 = vadd.f32 %v1653, %v1667
          %v1728 = vadd.f32 %v1654, %v1668
          %v1729 = vadd.f32 %v1655, %v1665
          %v1730 = vadd.f32 %v1656, %v1666
          %v1731 = vadd.f32 %v1657, %v1667
          %v1732 = vadd.f32 %v1658, %v1668
          %v1733 = vadd.f32 %v1659, %v1665
          %v1734 = vadd.f32 %v1660, %v1666
          %v1735 = vadd.f32 %v1661, %v1667
          %v1736 = vadd.f32 %v1662, %v1668
          %v1737 = vmax.f32 %v1673, 0.0
          %v1738 = vmax.f32 %v1674, 0.0
          %v1739 = vmax.f32 %v1675, 0.0
          %v1740 = vmax.f32 %v1676, 0.0
          %v1741 = vmax.f32 %v1677, 0.0
          %v1742 = vmax.f32 %v1678, 0.0
          %v1743 = vmax.f32 %v1679, 0.0
          %v1744 = vmax.f32 %v1680, 0.0
          %v1745 = vmax.f32 %v1681, 0.0
          %v1746 = vmax.f32 %v1682, 0.0
          %v1747 = vmax.f32 %v1683, 0.0
          %v1748 = vmax.f32 %v1684, 0.0
          %v1749 = vmax.f32 %v1685, 0.0
          %v1750 = vmax.f32 %v1686, 0.0
          %v1751 = vmax.f32 %v1687, 0.0
          %v1752 = vmax.f32 %v1688, 0.0
          %v1753 = vmax.f32 %v1689, 0.0
          %v1754 = vmax.f32 %v1690, 0.0
          %v1755 = vmax.f32 %v1691, 0.0
          %v1756 = vmax.f32 %v1692, 0.0
          %v1757 = vmax.f32 %v1693, 0.0
          %v1758 = vmax.f32 %v1694, 0.0
          %v1759 = vmax.f32 %v1695, 0.0
          %v1760 = vmax.f32 %v1696, 0.0
          %v1761 = vmax.f32 %v1697, 0.0
          %v1762 = vmax.f32 %v1698, 0.0
          %v1763 = vmax.f32 %v1699, 0.0
          %v1764 = vmax.f32 %v1700, 0.0
          %v1765 = vmax.f32 %v1701, 0.0
          %v1766 = vmax.f32 %v1702, 0.0
          %v1767 = vmax.f32 %v1703, 0.0
          %v1768 = vmax.f32 %v1704, 0.0
          %v1769 = vmax.f32 %v1705, 0.0
          %v1770 = vmax.f32 %v1706, 0.0
          %v1771 = vmax.f32 %v1707, 0.0
          %v1772 = vmax.f32 %v1708, 0.0
          %v1773 = vmax.f32 %v1709, 0.0
          %v1774 = vmax.f32 %v1710, 0.0
          %v1775 = vmax.f32 %v1711, 0.0
          %v1776 = vmax.f32 %v1712, 0.0
          %v1777 = vmax.f32 %v1713, 0.0
          %v1778 = vmax.f32 %v1714, 0.0
          %v1779 = vmax.f32 %v1715, 0.0
          %v1780 = vmax.f32 %v1716, 0.0
          %v1781 = vmax.f32 %v1717, 0.0
          %v1782 = vmax.f32 %v1718, 0.0
          %v1783 = vmax.f32 %v1719, 0.0
          %v1784 = vmax.f32 %v1720, 0.0
          %v1785 = vmax.f32 %v1721, 0.0
          %v1786 = vmax.f32 %v1722, 0.0
          %v1787 = vmax.f32 %v1723, 0.0
          %v1788 = vmax.f32 %v1724, 0.0
          %v1789 = vmax.f32 %v1725, 0.0
          %v1790 = vmax.f32 %v1726, 0.0
          %v1791 = vmax.f32 %v1727, 0.0
          %v1792 = vmax.f32 %v1728, 0.0
          %v1793 = vmax.f32 %v1729, 0.0
          %v1794 = vmax.f32 %v1730, 0.0
          %v1795 = vmax.f32 %v1731, 0.0
          %v1796 = vmax.f32 %v1732, 0.0
          %v1797 = vmax.f32 %v1733, 0.0
          %v1798 = vmax.f32 %v1734, 0.0
          %v1799 = vmax.f32 %v1735, 0.0
          %v1800 = vmax.f32 %v1736, 0.0
          %v1801 = vpack.c.bf16 %v1741, %v1737
          %v1802 = vpack.c.bf16 %v1742, %v1738
          %v1803 = vpack.c.bf16 %v1743, %v1739
          %v1804 = vpack.c.bf16 %v1744, %v1740
          %v1805 = vpack.c.bf16 %v1749, %v1745
          %v1806 = vpack.c.bf16 %v1750, %v1746
          %v1807 = vpack.c.bf16 %v1751, %v1747
          %v1808 = vpack.c.bf16 %v1752, %v1748
          %v1809 = vpack.c.bf16 %v1757, %v1753
          %v1810 = vpack.c.bf16 %v1758, %v1754
          %v1811 = vpack.c.bf16 %v1759, %v1755
          %v1812 = vpack.c.bf16 %v1760, %v1756
          %v1813 = vpack.c.bf16 %v1765, %v1761
          %v1814 = vpack.c.bf16 %v1766, %v1762
          %v1815 = vpack.c.bf16 %v1767, %v1763
          %v1816 = vpack.c.bf16 %v1768, %v1764
          %v1817 = vpack.c.bf16 %v1773, %v1769
          %v1818 = vpack.c.bf16 %v1774, %v1770
          %v1819 = vpack.c.bf16 %v1775, %v1771
          %v1820 = vpack.c.bf16 %v1776, %v1772
          %v1821 = vpack.c.bf16 %v1781, %v1777
          %v1822 = vpack.c.bf16 %v1782, %v1778
          %v1823 = vpack.c.bf16 %v1783, %v1779
          %v1824 = vpack.c.bf16 %v1784, %v1780
          %v1825 = vpack.c.bf16 %v1789, %v1785
          %v1826 = vpack.c.bf16 %v1790, %v1786
          %v1827 = vpack.c.bf16 %v1791, %v1787
          %v1828 = vpack.c.bf16 %v1792, %v1788
          %v1829 = vpack.c.bf16 %v1797, %v1793
          %v1830 = vpack.c.bf16 %v1798, %v1794
          %v1831 = vpack.c.bf16 %v1799, %v1795
          %v1832 = vpack.c.bf16 %v1800, %v1796
          %v1833 = vld [vmem:[#allocation9] sm:$0xff]
          %v1834 = vld [vmem:[#allocation9 + $0x8] sm:$0xff]
          %v1835 = vld [vmem:[#allocation9 + $0x10] sm:$0xff]
          %v1836 = vld [vmem:[#allocation9 + $0x18] sm:$0xff]
          %v1837 = vld [vmem:[#allocation9 + $0x20] sm:$0xff]
          %v1838 = vld [vmem:[#allocation9 + $0x28] sm:$0xff]
          %v1839 = vld [vmem:[#allocation9 + $0x30] sm:$0xff]
          %v1840 = vld [vmem:[#allocation9 + $0x38] sm:$0xff]
          %v1841 = vld [vmem:[#allocation9 + $0x40] sm:$0xff]
          %v1842 = vld [vmem:[#allocation9 + $0x48] sm:$0xff]
          %v1843 = vld [vmem:[#allocation9 + $0x50] sm:$0xff]
          %v1844 = vld [vmem:[#allocation9 + $0x58] sm:$0xff]
          %v1845 = vld [vmem:[#allocation9 + $0x60] sm:$0xff]
          %v1846 = vld [vmem:[#allocation9 + $0x68] sm:$0xff]
          %v1847 = vld [vmem:[#allocation9 + $0x70] sm:$0xff]
          %v1848 = vld [vmem:[#allocation9 + $0x78] sm:$0xff]
          %v1849 = vld [vmem:[#allocation9 + $0x80] sm:$0xff]
          %v1850 = vld [vmem:[#allocation9 + $0x88] sm:$0xff]
          %v1851 = vld [vmem:[#allocation9 + $0x90] sm:$0xff]
          %v1852 = vld [vmem:[#allocation9 + $0x98] sm:$0xff]
          %v1853 = vld [vmem:[#allocation9 + $0xa0] sm:$0xff]
          %v1854 = vld [vmem:[#allocation9 + $0xa8] sm:$0xff]
          %v1855 = vld [vmem:[#allocation9 + $0xb0] sm:$0xff]
          %v1856 = vld [vmem:[#allocation9 + $0xb8] sm:$0xff]
          %v1857 = vld [vmem:[#allocation9 + $0xc0] sm:$0xff]
          %v1858 = vld [vmem:[#allocation9 + $0xc8] sm:$0xff]
          %v1859 = vld [vmem:[#allocation9 + $0xd0] sm:$0xff]
          %v1860 = vld [vmem:[#allocation9 + $0xd8] sm:$0xff]
          %v1861 = vld [vmem:[#allocation9 + $0xe0] sm:$0xff]
          %v1862 = vld [vmem:[#allocation9 + $0xe8] sm:$0xff]
          %v1863 = vld [vmem:[#allocation9 + $0xf0] sm:$0xff]
          %v1864 = vld [vmem:[#allocation9 + $0xf8] sm:$0xff]
          %v1865 = vld [vmem:[#allocation9 + $0x100] sm:$0xff]
          %v1866 = vld [vmem:[#allocation9 + $0x108] sm:$0xff]
          %v1867 = vld [vmem:[#allocation9 + $0x110] sm:$0xff]
          %v1868 = vld [vmem:[#allocation9 + $0x118] sm:$0xff]
          %v1869 = vld [vmem:[#allocation9 + $0x120] sm:$0xff]
          %v1870 = vld [vmem:[#allocation9 + $0x128] sm:$0xff]
          %v1871 = vld [vmem:[#allocation9 + $0x130] sm:$0xff]
          %v1872 = vld [vmem:[#allocation9 + $0x138] sm:$0xff]
          %v1873 = vld [vmem:[#allocation9 + $0x140] sm:$0xff]
          %v1874 = vld [vmem:[#allocation9 + $0x148] sm:$0xff]
          %v1875 = vld [vmem:[#allocation9 + $0x150] sm:$0xff]
          %v1876 = vld [vmem:[#allocation9 + $0x158] sm:$0xff]
          %v1877 = vld [vmem:[#allocation9 + $0x160] sm:$0xff]
          %v1878 = vld [vmem:[#allocation9 + $0x168] sm:$0xff]
          %v1879 = vld [vmem:[#allocation9 + $0x170] sm:$0xff]
          %v1880 = vld [vmem:[#allocation9 + $0x178] sm:$0xff]
          %v1881 = vld [vmem:[#allocation9 + $0x180] sm:$0xff]
          %v1882 = vld [vmem:[#allocation9 + $0x188] sm:$0xff]
          %v1883 = vld [vmem:[#allocation9 + $0x190] sm:$0xff]
          %v1884 = vld [vmem:[#allocation9 + $0x198] sm:$0xff]
          %v1885 = vld [vmem:[#allocation9 + $0x1a0] sm:$0xff]
          %v1886 = vld [vmem:[#allocation9 + $0x1a8] sm:$0xff]
          %v1887 = vld [vmem:[#allocation9 + $0x1b0] sm:$0xff]
          %v1888 = vld [vmem:[#allocation9 + $0x1b8] sm:$0xff]
          %v1889 = vld [vmem:[#allocation9 + $0x1c0] sm:$0xff]
          %v1890 = vld [vmem:[#allocation9 + $0x1c8] sm:$0xff]
          %v1891 = vld [vmem:[#allocation9 + $0x1d0] sm:$0xff]
          %v1892 = vld [vmem:[#allocation9 + $0x1d8] sm:$0xff]
          %v1893 = vld [vmem:[#allocation9 + $0x1e0] sm:$0xff]
          %v1894 = vld [vmem:[#allocation9 + $0x1e8] sm:$0xff]
          %v1895 = vld [vmem:[#allocation9 + $0x1f0] sm:$0xff]
          %v1896 = vld [vmem:[#allocation9 + $0x1f8] sm:$0xff]
          %v1897 = vld [vmem:[%s4] sm:$0x3]
          %v1899 = vperm.slane %v1897, 0
          %v1900 = vperm.slane %v1897, 1
          %v1967 = vunpack.c.l.b16 %v1833
          %v1968 = vunpack.c.h.b16 %v1833
          %v1969 = vunpack.c.l.b16 %v1834
          %v1970 = vunpack.c.h.b16 %v1834
          %v1971 = vunpack.c.l.b16 %v1835
          %v1972 = vunpack.c.h.b16 %v1835
          %v1973 = vunpack.c.l.b16 %v1836
          %v1974 = vunpack.c.h.b16 %v1836
          %v1975 = vunpack.c.l.b16 %v1837
          %v1976 = vunpack.c.h.b16 %v1837
          %v1977 = vunpack.c.l.b16 %v1838
          %v1978 = vunpack.c.h.b16 %v1838
          %v1979 = vunpack.c.l.b16 %v1839
          %v1980 = vunpack.c.h.b16 %v1839
          %v1981 = vunpack.c.l.b16 %v1840
          %v1982 = vunpack.c.h.b16 %v1840
          %v1983 = vunpack.c.l.b16 %v1841
          %v1984 = vunpack.c.h.b16 %v1841
          %v1985 = vunpack.c.l.b16 %v1842
          %v1986 = vunpack.c.h.b16 %v1842
          %v1987 = vunpack.c.l.b16 %v1843
          %v1988 = vunpack.c.h.b16 %v1843
          %v1989 = vunpack.c.l.b16 %v1844
          %v1990 = vunpack.c.h.b16 %v1844
          %v1991 = vunpack.c.l.b16 %v1845
          %v1992 = vunpack.c.h.b16 %v1845
          %v1993 = vunpack.c.l.b16 %v1846
          %v1994 = vunpack.c.h.b16 %v1846
          %v1995 = vunpack.c.l.b16 %v1847
          %v1996 = vunpack.c.h.b16 %v1847
          %v1997 = vunpack.c.l.b16 %v1848
          %v1998 = vunpack.c.h.b16 %v1848
          %v1999 = vunpack.c.l.b16 %v1849
          %v2000 = vunpack.c.h.b16 %v1849
          %v2001 = vunpack.c.l.b16 %v1850
          %v2002 = vunpack.c.h.b16 %v1850
          %v2003 = vunpack.c.l.b16 %v1851
          %v2004 = vunpack.c.h.b16 %v1851
          %v2005 = vunpack.c.l.b16 %v1852
          %v2006 = vunpack.c.h.b16 %v1852
          %v2007 = vunpack.c.l.b16 %v1853
          %v2008 = vunpack.c.h.b16 %v1853
          %v2009 = vunpack.c.l.b16 %v1854
          %v2010 = vunpack.c.h.b16 %v1854
          %v2011 = vunpack.c.l.b16 %v1855
          %v2012 = vunpack.c.h.b16 %v1855
          %v2013 = vunpack.c.l.b16 %v1856
          %v2014 = vunpack.c.h.b16 %v1856
          %v2015 = vunpack.c.l.b16 %v1857
          %v2016 = vunpack.c.h.b16 %v1857
          %v2017 = vunpack.c.l.b16 %v1858
          %v2018 = vunpack.c.h.b16 %v1858
          %v2019 = vunpack.c.l.b16 %v1859
          %v2020 = vunpack.c.h.b16 %v1859
          %v2021 = vunpack.c.l.b16 %v1860
          %v2022 = vunpack.c.h.b16 %v1860
          %v2023 = vunpack.c.l.b16 %v1861
          %v2024 = vunpack.c.h.b16 %v1861
          %v2025 = vunpack.c.l.b16 %v1862
          %v2026 = vunpack.c.h.b16 %v1862
          %v2027 = vunpack.c.l.b16 %v1863
          %v2028 = vunpack.c.h.b16 %v1863
          %v2029 = vunpack.c.l.b16 %v1864
          %v2030 = vunpack.c.h.b16 %v1864
          %v2031 = vunpack.c.l.b16 %v1865
          %v2032 = vunpack.c.h.b16 %v1865
          %v2033 = vunpack.c.l.b16 %v1866
          %v2034 = vunpack.c.h.b16 %v1866
          %v2035 = vunpack.c.l.b16 %v1867
          %v2036 = vunpack.c.h.b16 %v1867
          %v2037 = vunpack.c.l.b16 %v1868
          %v2038 = vunpack.c.h.b16 %v1868
          %v2039 = vunpack.c.l.b16 %v1869
          %v2040 = vunpack.c.h.b16 %v1869
          %v2041 = vunpack.c.l.b16 %v1870
          %v2042 = vunpack.c.h.b16 %v1870
          %v2043 = vunpack.c.l.b16 %v1871
          %v2044 = vunpack.c.h.b16 %v1871
          %v2045 = vunpack.c.l.b16 %v1872
          %v2046 = vunpack.c.h.b16 %v1872
          %v2047 = vunpack.c.l.b16 %v1873
          %v2048 = vunpack.c.h.b16 %v1873
          %v2049 = vunpack.c.l.b16 %v1874
          %v2050 = vunpack.c.h.b16 %v1874
          %v2051 = vunpack.c.l.b16 %v1875
          %v2052 = vunpack.c.h.b16 %v1875
          %v2053 = vunpack.c.l.b16 %v1876
          %v2054 = vunpack.c.h.b16 %v1876
          %v2055 = vunpack.c.l.b16 %v1877
          %v2056 = vunpack.c.h.b16 %v1877
          %v2057 = vunpack.c.l.b16 %v1878
          %v2058 = vunpack.c.h.b16 %v1878
          %v2059 = vunpack.c.l.b16 %v1879
          %v2060 = vunpack.c.h.b16 %v1879
          %v2061 = vunpack.c.l.b16 %v1880
          %v2062 = vunpack.c.h.b16 %v1880
          %v2063 = vunpack.c.l.b16 %v1881
          %v2064 = vunpack.c.h.b16 %v1881
          %v2065 = vunpack.c.l.b16 %v1882
          %v2066 = vunpack.c.h.b16 %v1882
          %v2067 = vunpack.c.l.b16 %v1883
          %v2068 = vunpack.c.h.b16 %v1883
          %v2069 = vunpack.c.l.b16 %v1884
          %v2070 = vunpack.c.h.b16 %v1884
          %v2071 = vunpack.c.l.b16 %v1885
          %v2072 = vunpack.c.h.b16 %v1885
          %v2073 = vunpack.c.l.b16 %v1886
          %v2074 = vunpack.c.h.b16 %v1886
          %v2075 = vunpack.c.l.b16 %v1887
          %v2076 = vunpack.c.h.b16 %v1887
          %v2077 = vunpack.c.l.b16 %v1888
          %v2078 = vunpack.c.h.b16 %v1888
          %v2079 = vunpack.c.l.b16 %v1889
          %v2080 = vunpack.c.h.b16 %v1889
          %v2081 = vunpack.c.l.b16 %v1890
          %v2082 = vunpack.c.h.b16 %v1890
          %v2083 = vunpack.c.l.b16 %v1891
          %v2084 = vunpack.c.h.b16 %v1891
          %v2085 = vunpack.c.l.b16 %v1892
          %v2086 = vunpack.c.h.b16 %v1892
          %v2087 = vunpack.c.l.b16 %v1893
          %v2088 = vunpack.c.h.b16 %v1893
          %v2089 = vunpack.c.l.b16 %v1894
          %v2090 = vunpack.c.h.b16 %v1894
          %v2091 = vunpack.c.l.b16 %v1895
          %v2092 = vunpack.c.h.b16 %v1895
          %v2093 = vunpack.c.l.b16 %v1896
          %v2094 = vunpack.c.h.b16 %v1896
          %v2095 = vpack.c.b16 %v1969, %v1967
          %v2096 = vpack.c.b16 %v1970, %v1968
          %v2097 = vpack.c.b16 %v1973, %v1971
          %v2098 = vpack.c.b16 %v1974, %v1972
          %v2099 = vpack.c.b16 %v1977, %v1975
          %v2100 = vpack.c.b16 %v1978, %v1976
          %v2101 = vpack.c.b16 %v1981, %v1979
          %v2102 = vpack.c.b16 %v1982, %v1980
          %v2103 = vpack.c.b16 %v1985, %v1983
          %v2104 = vpack.c.b16 %v1986, %v1984
          %v2105 = vpack.c.b16 %v1989, %v1987
          %v2106 = vpack.c.b16 %v1990, %v1988
          %v2107 = vpack.c.b16 %v1993, %v1991
          %v2108 = vpack.c.b16 %v1994, %v1992
          %v2109 = vpack.c.b16 %v1997, %v1995
          %v2110 = vpack.c.b16 %v1998, %v1996
          %v2111 = vpack.c.b16 %v2001, %v1999
          %v2112 = vpack.c.b16 %v2002, %v2000
          %v2113 = vpack.c.b16 %v2005, %v2003
          %v2114 = vpack.c.b16 %v2006, %v2004
          %v2115 = vpack.c.b16 %v2009, %v2007
          %v2116 = vpack.c.b16 %v2010, %v2008
          %v2117 = vpack.c.b16 %v2013, %v2011
          %v2118 = vpack.c.b16 %v2014, %v2012
          %v2119 = vpack.c.b16 %v2017, %v2015
          %v2120 = vpack.c.b16 %v2018, %v2016
          %v2121 = vpack.c.b16 %v2021, %v2019
          %v2122 = vpack.c.b16 %v2022, %v2020
          %v2123 = vpack.c.b16 %v2025, %v2023
          %v2124 = vpack.c.b16 %v2026, %v2024
          %v2125 = vpack.c.b16 %v2029, %v2027
          %v2126 = vpack.c.b16 %v2030, %v2028
          %v2127 = vpack.c.b16 %v2033, %v2031
          %v2128 = vpack.c.b16 %v2034, %v2032
          %v2129 = vpack.c.b16 %v2037, %v2035
          %v2130 = vpack.c.b16 %v2038, %v2036
          %v2131 = vpack.c.b16 %v2041, %v2039
          %v2132 = vpack.c.b16 %v2042, %v2040
          %v2133 = vpack.c.b16 %v2045, %v2043
          %v2134 = vpack.c.b16 %v2046, %v2044
          %v2135 = vpack.c.b16 %v2049, %v2047
          %v2136 = vpack.c.b16 %v2050, %v2048
          %v2137 = vpack.c.b16 %v2053, %v2051
          %v2138 = vpack.c.b16 %v2054, %v2052
          %v2139 = vpack.c.b16 %v2057, %v2055
          %v2140 = vpack.c.b16 %v2058, %v2056
          %v2141 = vpack.c.b16 %v2061, %v2059
          %v2142 = vpack.c.b16 %v2062, %v2060
          %v2143 = vpack.c.b16 %v2065, %v2063
          %v2144 = vpack.c.b16 %v2066, %v2064
          %v2145 = vpack.c.b16 %v2069, %v2067
          %v2146 = vpack.c.b16 %v2070, %v2068
          %v2147 = vpack.c.b16 %v2073, %v2071
          %v2148 = vpack.c.b16 %v2074, %v2072
          %v2149 = vpack.c.b16 %v2077, %v2075
          %v2150 = vpack.c.b16 %v2078, %v2076
          %v2151 = vpack.c.b16 %v2081, %v2079
          %v2152 = vpack.c.b16 %v2082, %v2080
          %v2153 = vpack.c.b16 %v2085, %v2083
          %v2154 = vpack.c.b16 %v2086, %v2084
          %v2155 = vpack.c.b16 %v2089, %v2087
          %v2156 = vpack.c.b16 %v2090, %v2088
          %v2157 = vpack.c.b16 %v2093, %v2091
          %v2158 = vpack.c.b16 %v2094, %v2092
          %2223 = vmatpush.bf16.msra.mxu0 %v2109
          %2224 = vmatpush.bf16.msra.mxu0 %v2107
          %2225 = vmatpush.bf16.msra.mxu0 %v2105
          %2226 = vmatpush.bf16.msra.mxu0 %v2103
          %2227 = vmatpush.bf16.msra.mxu0 %v2101
          %2228 = vmatpush.bf16.msra.mxu0 %v2099
          %2229 = vmatpush.bf16.msra.mxu0 %v2097
          %2230 = vmatpush.bf16.msra.mxu0 %v2095
          %2231 = vmatmul.bf16.gmra.mxu0 %v1801
          %v2232 = vpop.f32.mrf.mxu0
          %v2233 = vadd.f32 %v1899, %v2232
          %v2234 = vpop.f32.mrf.mxu0
          %v2235 = vadd.f32 %v1899, %v2234
          %2236 = vmatmul.bf16.gmra.mxu0 %v1805
          %v2237 = vpop.f32.mrf.mxu0
          %v2238 = vadd.f32 %v1899, %v2237
          %v2239 = vpop.f32.mrf.mxu0
          %v2240 = vadd.f32 %v1899, %v2239
          %2241 = vmatmul.bf16.gmra.mxu0 %v1809
          %v2242 = vpop.f32.mrf.mxu0
          %v2243 = vadd.f32 %v1899, %v2242
          %v2244 = vpop.f32.mrf.mxu0
          %v2245 = vadd.f32 %v1899, %v2244
          %2246 = vmatmul.bf16.gmra.mxu0 %v1813
          %v2247 = vpop.f32.mrf.mxu0
          %v2248 = vadd.f32 %v1899, %v2247
          %v2249 = vpop.f32.mrf.mxu0
          %v2250 = vadd.f32 %v1899, %v2249
          %2251 = vmatmul.bf16.gmra.mxu0 %v1817
          %v2252 = vpop.f32.mrf.mxu0
          %v2253 = vadd.f32 %v1899, %v2252
          %v2254 = vpop.f32.mrf.mxu0
          %v2255 = vadd.f32 %v1899, %v2254
          %2256 = vmatmul.bf16.gmra.mxu0 %v1821
          %v2257 = vpop.f32.mrf.mxu0
          %v2258 = vadd.f32 %v1899, %v2257
          %v2259 = vpop.f32.mrf.mxu0
          %v2260 = vadd.f32 %v1899, %v2259
          %2261 = vmatmul.bf16.gmra.mxu0 %v1825
          %v2262 = vpop.f32.mrf.mxu0
          %v2263 = vadd.f32 %v1899, %v2262
          %v2264 = vpop.f32.mrf.mxu0
          %v2265 = vadd.f32 %v1899, %v2264
          %2266 = vmatmul.bf16.gmra.mxu0 %v1829
          %v2267 = vpop.f32.mrf.mxu0
          %v2268 = vadd.f32 %v1899, %v2267
          %v2269 = vpop.f32.mrf.mxu0
          %v2270 = vadd.f32 %v1899, %v2269
          %2271 = vdwg.mxu0
          %2272 = vmatpush.bf16.msra.mxu0 %v2125
          %2273 = vmatpush.bf16.msra.mxu0 %v2123
          %2274 = vmatpush.bf16.msra.mxu0 %v2121
          %2275 = vmatpush.bf16.msra.mxu0 %v2119
          %2276 = vmatpush.bf16.msra.mxu0 %v2117
          %2277 = vmatpush.bf16.msra.mxu0 %v2115
          %2278 = vmatpush.bf16.msra.mxu0 %v2113
          %2279 = vmatpush.bf16.msra.mxu0 %v2111
          %2280 = vmatmul.bf16.gmra.mxu0 %v1802
          %v2281 = vpop.f32.mrf.mxu0
          %v2282 = vadd.f32 %v2233, %v2281
          %v2283 = vpop.f32.mrf.mxu0
          %v2284 = vadd.f32 %v2235, %v2283
          %2285 = vmatmul.bf16.gmra.mxu0 %v1806
          %v2286 = vpop.f32.mrf.mxu0
          %v2287 = vadd.f32 %v2238, %v2286
          %v2288 = vpop.f32.mrf.mxu0
          %v2289 = vadd.f32 %v2240, %v2288
          %2290 = vmatmul.bf16.gmra.mxu0 %v1810
          %v2291 = vpop.f32.mrf.mxu0
          %v2292 = vadd.f32 %v2243, %v2291
          %v2293 = vpop.f32.mrf.mxu0
          %v2294 = vadd.f32 %v2245, %v2293
          %2295 = vmatmul.bf16.gmra.mxu0 %v1814
          %v2296 = vpop.f32.mrf.mxu0
          %v2297 = vadd.f32 %v2248, %v2296
          %v2298 = vpop.f32.mrf.mxu0
          %v2299 = vadd.f32 %v2250, %v2298
          %2300 = vmatmul.bf16.gmra.mxu0 %v1818
          %v2301 = vpop.f32.mrf.mxu0
          %v2302 = vadd.f32 %v2253, %v2301
          %v2303 = vpop.f32.mrf.mxu0
          %v2304 = vadd.f32 %v2255, %v2303
          %2305 = vmatmul.bf16.gmra.mxu0 %v1822
          %v2306 = vpop.f32.mrf.mxu0
          %v2307 = vadd.f32 %v2258, %v2306
          %v2308 = vpop.f32.mrf.mxu0
          %v2309 = vadd.f32 %v2260, %v2308
          %2310 = vmatmul.bf16.gmra.mxu0 %v1826
          %v2311 = vpop.f32.mrf.mxu0
          %v2312 = vadd.f32 %v2263, %v2311
          %v2313 = vpop.f32.mrf.mxu0
          %v2314 = vadd.f32 %v2265, %v2313
          %2315 = vmatmul.bf16.gmra.mxu0 %v1830
          %v2316 = vpop.f32.mrf.mxu0
          %v2317 = vadd.f32 %v2268, %v2316
          %v2318 = vpop.f32.mrf.mxu0
          %v2319 = vadd.f32 %v2270, %v2318
          %2320 = vdwg.mxu0
          %2321 = vmatpush.bf16.msra.mxu0 %v2141
          %2322 = vmatpush.bf16.msra.mxu0 %v2139
          %2323 = vmatpush.bf16.msra.mxu0 %v2137
          %2324 = vmatpush.bf16.msra.mxu0 %v2135
          %2325 = vmatpush.bf16.msra.mxu0 %v2133
          %2326 = vmatpush.bf16.msra.mxu0 %v2131
          %2327 = vmatpush.bf16.msra.mxu0 %v2129
          %2328 = vmatpush.bf16.msra.mxu0 %v2127
          %2329 = vmatmul.bf16.gmra.mxu0 %v1803
          %v2330 = vpop.f32.mrf.mxu0
          %v2331 = vadd.f32 %v2282, %v2330
          %v2332 = vpop.f32.mrf.mxu0
          %v2333 = vadd.f32 %v2284, %v2332
          %2334 = vmatmul.bf16.gmra.mxu0 %v1807
          %v2335 = vpop.f32.mrf.mxu0
          %v2336 = vadd.f32 %v2287, %v2335
          %v2337 = vpop.f32.mrf.mxu0
          %v2338 = vadd.f32 %v2289, %v2337
          %2339 = vmatmul.bf16.gmra.mxu0 %v1811
          %v2340 = vpop.f32.mrf.mxu0
          %v2341 = vadd.f32 %v2292, %v2340
          %v2342 = vpop.f32.mrf.mxu0
          %v2343 = vadd.f32 %v2294, %v2342
          %2344 = vmatmul.bf16.gmra.mxu0 %v1815
          %v2345 = vpop.f32.mrf.mxu0
          %v2346 = vadd.f32 %v2297, %v2345
          %v2347 = vpop.f32.mrf.mxu0
          %v2348 = vadd.f32 %v2299, %v2347
          %2349 = vmatmul.bf16.gmra.mxu0 %v1819
          %v2350 = vpop.f32.mrf.mxu0
          %v2351 = vadd.f32 %v2302, %v2350
          %v2352 = vpop.f32.mrf.mxu0
          %v2353 = vadd.f32 %v2304, %v2352
          %2354 = vmatmul.bf16.gmra.mxu0 %v1823
          %v2355 = vpop.f32.mrf.mxu0
          %v2356 = vadd.f32 %v2307, %v2355
          %v2357 = vpop.f32.mrf.mxu0
          %v2358 = vadd.f32 %v2309, %v2357
          %2359 = vmatmul.bf16.gmra.mxu0 %v1827
          %v2360 = vpop.f32.mrf.mxu0
          %v2361 = vadd.f32 %v2312, %v2360
          %v2362 = vpop.f32.mrf.mxu0
          %v2363 = vadd.f32 %v2314, %v2362
          %2364 = vmatmul.bf16.gmra.mxu0 %v1831
          %v2365 = vpop.f32.mrf.mxu0
          %v2366 = vadd.f32 %v2317, %v2365
          %v2367 = vpop.f32.mrf.mxu0
          %v2368 = vadd.f32 %v2319, %v2367
          %2369 = vdwg.mxu0
          %2370 = vmatpush.bf16.msra.mxu0 %v2157
          %2371 = vmatpush.bf16.msra.mxu0 %v2155
          %2372 = vmatpush.bf16.msra.mxu0 %v2153
          %2373 = vmatpush.bf16.msra.mxu0 %v2151
          %2374 = vmatpush.bf16.msra.mxu0 %v2149
          %2375 = vmatpush.bf16.msra.mxu0 %v2147
          %2376 = vmatpush.bf16.msra.mxu0 %v2145
          %2377 = vmatpush.bf16.msra.mxu0 %v2143
          %2378 = vmatmul.bf16.gmra.mxu0 %v1804
          %v2379 = vpop.f32.mrf.mxu0
          %v2380 = vadd.f32 %v2331, %v2379
          %v2381 = vpop.f32.mrf.mxu0
          %v2382 = vadd.f32 %v2333, %v2381
          %2383 = vmatmul.bf16.gmra.mxu0 %v1808
          %v2384 = vpop.f32.mrf.mxu0
          %v2385 = vadd.f32 %v2336, %v2384
          %v2386 = vpop.f32.mrf.mxu0
          %v2387 = vadd.f32 %v2338, %v2386
          %2388 = vmatmul.bf16.gmra.mxu0 %v1812
          %v2389 = vpop.f32.mrf.mxu0
          %v2390 = vadd.f32 %v2341, %v2389
          %v2391 = vpop.f32.mrf.mxu0
          %v2392 = vadd.f32 %v2343, %v2391
          %2393 = vmatmul.bf16.gmra.mxu0 %v1816
          %v2394 = vpop.f32.mrf.mxu0
          %v2395 = vadd.f32 %v2346, %v2394
          %v2396 = vpop.f32.mrf.mxu0
          %v2397 = vadd.f32 %v2348, %v2396
          %2398 = vmatmul.bf16.gmra.mxu0 %v1820
          %v2399 = vpop.f32.mrf.mxu0
          %v2400 = vadd.f32 %v2351, %v2399
          %v2401 = vpop.f32.mrf.mxu0
          %v2402 = vadd.f32 %v2353, %v2401
          %2403 = vmatmul.bf16.gmra.mxu0 %v1824
          %v2404 = vpop.f32.mrf.mxu0
          %v2405 = vadd.f32 %v2356, %v2404
          %v2406 = vpop.f32.mrf.mxu0
          %v2407 = vadd.f32 %v2358, %v2406
          %2408 = vmatmul.bf16.gmra.mxu0 %v1828
          %v2409 = vpop.f32.mrf.mxu0
          %v2410 = vadd.f32 %v2361, %v2409
          %v2411 = vpop.f32.mrf.mxu0
          %v2412 = vadd.f32 %v2363, %v2411
          %2413 = vmatmul.bf16.gmra.mxu0 %v1832
          %v2414 = vpop.f32.mrf.mxu0
          %v2415 = vadd.f32 %v2366, %v2414
          %v2416 = vpop.f32.mrf.mxu0
          %v2417 = vadd.f32 %v2368, %v2416
          %2418 = vdwg.mxu0
          %2419 = vmatpush.bf16.msra.mxu0 %v2110
          %2420 = vmatpush.bf16.msra.mxu0 %v2108
          %2421 = vmatpush.bf16.msra.mxu0 %v2106
          %2422 = vmatpush.bf16.msra.mxu0 %v2104
          %2423 = vmatpush.bf16.msra.mxu0 %v2102
          %2424 = vmatpush.bf16.msra.mxu0 %v2100
          %2425 = vmatpush.bf16.msra.mxu0 %v2098
          %2426 = vmatpush.bf16.msra.mxu0 %v2096
          %2427 = vmatmul.bf16.gmra.mxu0 %v1801
          %v2428 = vpop.f32.mrf.mxu0
          %v2429 = vadd.f32 %v1900, %v2428
          %v2430 = vpop.f32.mrf.mxu0
          %v2431 = vadd.f32 %v1900, %v2430
          %2432 = vmatmul.bf16.gmra.mxu0 %v1805
          %v2433 = vpop.f32.mrf.mxu0
          %v2434 = vadd.f32 %v1900, %v2433
          %v2435 = vpop.f32.mrf.mxu0
          %v2436 = vadd.f32 %v1900, %v2435
          %2437 = vmatmul.bf16.gmra.mxu0 %v1809
          %v2438 = vpop.f32.mrf.mxu0
          %v2439 = vadd.f32 %v1900, %v2438
          %v2440 = vpop.f32.mrf.mxu0
          %v2441 = vadd.f32 %v1900, %v2440
          %2442 = vmatmul.bf16.gmra.mxu0 %v1813
          %v2443 = vpop.f32.mrf.mxu0
          %v2444 = vadd.f32 %v1900, %v2443
          %v2445 = vpop.f32.mrf.mxu0
          %v2446 = vadd.f32 %v1900, %v2445
          %2447 = vmatmul.bf16.gmra.mxu0 %v1817
          %v2448 = vpop.f32.mrf.mxu0
          %v2449 = vadd.f32 %v1900, %v2448
          %v2450 = vpop.f32.mrf.mxu0
          %v2451 = vadd.f32 %v1900, %v2450
          %2452 = vmatmul.bf16.gmra.mxu0 %v1821
          %v2453 = vpop.f32.mrf.mxu0
          %v2454 = vadd.f32 %v1900, %v2453
          %v2455 = vpop.f32.mrf.mxu0
          %v2456 = vadd.f32 %v1900, %v2455
          %2457 = vmatmul.bf16.gmra.mxu0 %v1825
          %v2458 = vpop.f32.mrf.mxu0
          %v2459 = vadd.f32 %v1900, %v2458
          %v2460 = vpop.f32.mrf.mxu0
          %v2461 = vadd.f32 %v1900, %v2460
          %2462 = vmatmul.bf16.gmra.mxu0 %v1829
          %v2463 = vpop.f32.mrf.mxu0
          %v2464 = vadd.f32 %v1900, %v2463
          %v2465 = vpop.f32.mrf.mxu0
          %v2466 = vadd.f32 %v1900, %v2465
          %2467 = vdwg.mxu0
          %2468 = vmatpush.bf16.msra.mxu0 %v2126
          %2469 = vmatpush.bf16.msra.mxu0 %v2124
          %2470 = vmatpush.bf16.msra.mxu0 %v2122
          %2471 = vmatpush.bf16.msra.mxu0 %v2120
          %2472 = vmatpush.bf16.msra.mxu0 %v2118
          %2473 = vmatpush.bf16.msra.mxu0 %v2116
          %2474 = vmatpush.bf16.msra.mxu0 %v2114
          %2475 = vmatpush.bf16.msra.mxu0 %v2112
          %2476 = vmatmul.bf16.gmra.mxu0 %v1802
          %v2477 = vpop.f32.mrf.mxu0
          %v2478 = vadd.f32 %v2429, %v2477
          %v2479 = vpop.f32.mrf.mxu0
          %v2480 = vadd.f32 %v2431, %v2479
          %2481 = vmatmul.bf16.gmra.mxu0 %v1806
          %v2482 = vpop.f32.mrf.mxu0
          %v2483 = vadd.f32 %v2434, %v2482
          %v2484 = vpop.f32.mrf.mxu0
          %v2485 = vadd.f32 %v2436, %v2484
          %2486 = vmatmul.bf16.gmra.mxu0 %v1810
          %v2487 = vpop.f32.mrf.mxu0
          %v2488 = vadd.f32 %v2439, %v2487
          %v2489 = vpop.f32.mrf.mxu0
          %v2490 = vadd.f32 %v2441, %v2489
          %2491 = vmatmul.bf16.gmra.mxu0 %v1814
          %v2492 = vpop.f32.mrf.mxu0
          %v2493 = vadd.f32 %v2444, %v2492
          %v2494 = vpop.f32.mrf.mxu0
          %v2495 = vadd.f32 %v2446, %v2494
          %2496 = vmatmul.bf16.gmra.mxu0 %v1818
          %v2497 = vpop.f32.mrf.mxu0
          %v2498 = vadd.f32 %v2449, %v2497
          %v2499 = vpop.f32.mrf.mxu0
          %v2500 = vadd.f32 %v2451, %v2499
          %2501 = vmatmul.bf16.gmra.mxu0 %v1822
          %v2502 = vpop.f32.mrf.mxu0
          %v2503 = vadd.f32 %v2454, %v2502
          %v2504 = vpop.f32.mrf.mxu0
          %v2505 = vadd.f32 %v2456, %v2504
          %2506 = vmatmul.bf16.gmra.mxu0 %v1826
          %v2507 = vpop.f32.mrf.mxu0
          %v2508 = vadd.f32 %v2459, %v2507
          %v2509 = vpop.f32.mrf.mxu0
          %v2510 = vadd.f32 %v2461, %v2509
          %2511 = vmatmul.bf16.gmra.mxu0 %v1830
          %v2512 = vpop.f32.mrf.mxu0
          %v2513 = vadd.f32 %v2464, %v2512
          %v2514 = vpop.f32.mrf.mxu0
          %v2515 = vadd.f32 %v2466, %v2514
          %2516 = vdwg.mxu0
          %2517 = vmatpush.bf16.msra.mxu0 %v2142
          %2518 = vmatpush.bf16.msra.mxu0 %v2140
          %2519 = vmatpush.bf16.msra.mxu0 %v2138
          %2520 = vmatpush.bf16.msra.mxu0 %v2136
          %2521 = vmatpush.bf16.msra.mxu0 %v2134
          %2522 = vmatpush.bf16.msra.mxu0 %v2132
          %2523 = vmatpush.bf16.msra.mxu0 %v2130
          %2524 = vmatpush.bf16.msra.mxu0 %v2128
          %2525 = vmatmul.bf16.gmra.mxu0 %v1803
          %v2526 = vpop.f32.mrf.mxu0
          %v2527 = vadd.f32 %v2478, %v2526
          %v2528 = vpop.f32.mrf.mxu0
          %v2529 = vadd.f32 %v2480, %v2528
          %2530 = vmatmul.bf16.gmra.mxu0 %v1807
          %v2531 = vpop.f32.mrf.mxu0
          %v2532 = vadd.f32 %v2483, %v2531
          %v2533 = vpop.f32.mrf.mxu0
          %v2534 = vadd.f32 %v2485, %v2533
          %2535 = vmatmul.bf16.gmra.mxu0 %v1811
          %v2536 = vpop.f32.mrf.mxu0
          %v2537 = vadd.f32 %v2488, %v2536
          %v2538 = vpop.f32.mrf.mxu0
          %v2539 = vadd.f32 %v2490, %v2538
          %2540 = vmatmul.bf16.gmra.mxu0 %v1815
          %v2541 = vpop.f32.mrf.mxu0
          %v2542 = vadd.f32 %v2493, %v2541
          %v2543 = vpop.f32.mrf.mxu0
          %v2544 = vadd.f32 %v2495, %v2543
          %2545 = vmatmul.bf16.gmra.mxu0 %v1819
          %v2546 = vpop.f32.mrf.mxu0
          %v2547 = vadd.f32 %v2498, %v2546
          %v2548 = vpop.f32.mrf.mxu0
          %v2549 = vadd.f32 %v2500, %v2548
          %2550 = vmatmul.bf16.gmra.mxu0 %v1823
          %v2551 = vpop.f32.mrf.mxu0
          %v2552 = vadd.f32 %v2503, %v2551
          %v2553 = vpop.f32.mrf.mxu0
          %v2554 = vadd.f32 %v2505, %v2553
          %2555 = vmatmul.bf16.gmra.mxu0 %v1827
          %v2556 = vpop.f32.mrf.mxu0
          %v2557 = vadd.f32 %v2508, %v2556
          %v2558 = vpop.f32.mrf.mxu0
          %v2559 = vadd.f32 %v2510, %v2558
          %2560 = vmatmul.bf16.gmra.mxu0 %v1831
          %v2561 = vpop.f32.mrf.mxu0
          %v2562 = vadd.f32 %v2513, %v2561
          %v2563 = vpop.f32.mrf.mxu0
          %v2564 = vadd.f32 %v2515, %v2563
          %2565 = vdwg.mxu0
          %2566 = vmatpush.bf16.msra.mxu0 %v2158
          %2567 = vmatpush.bf16.msra.mxu0 %v2156
          %2568 = vmatpush.bf16.msra.mxu0 %v2154
          %2569 = vmatpush.bf16.msra.mxu0 %v2152
          %2570 = vmatpush.bf16.msra.mxu0 %v2150
          %2571 = vmatpush.bf16.msra.mxu0 %v2148
          %2572 = vmatpush.bf16.msra.mxu0 %v2146
          %2573 = vmatpush.bf16.msra.mxu0 %v2144
          %2574 = vmatmul.bf16.gmra.mxu0 %v1804
          %v2575 = vpop.f32.mrf.mxu0
          %v2576 = vadd.f32 %v2527, %v2575
          %v2577 = vpop.f32.mrf.mxu0
          %v2578 = vadd.f32 %v2529, %v2577
          %2579 = vmatmul.bf16.gmra.mxu0 %v1808
          %v2580 = vpop.f32.mrf.mxu0
          %v2581 = vadd.f32 %v2532, %v2580
          %v2582 = vpop.f32.mrf.mxu0
          %v2583 = vadd.f32 %v2534, %v2582
          %2584 = vmatmul.bf16.gmra.mxu0 %v1812
          %v2585 = vpop.f32.mrf.mxu0
          %v2586 = vadd.f32 %v2537, %v2585
          %v2587 = vpop.f32.mrf.mxu0
          %v2588 = vadd.f32 %v2539, %v2587
          %2589 = vmatmul.bf16.gmra.mxu0 %v1816
          %v2590 = vpop.f32.mrf.mxu0
          %v2591 = vadd.f32 %v2542, %v2590
          %v2592 = vpop.f32.mrf.mxu0
          %v2593 = vadd.f32 %v2544, %v2592
          %2594 = vmatmul.bf16.gmra.mxu0 %v1820
          %v2595 = vpop.f32.mrf.mxu0
          %v2596 = vadd.f32 %v2547, %v2595
          %v2597 = vpop.f32.mrf.mxu0
          %v2598 = vadd.f32 %v2549, %v2597
          %2599 = vmatmul.bf16.gmra.mxu0 %v1824
          %v2600 = vpop.f32.mrf.mxu0
          %v2601 = vadd.f32 %v2552, %v2600
          %v2602 = vpop.f32.mrf.mxu0
          %v2603 = vadd.f32 %v2554, %v2602
          %2604 = vmatmul.bf16.gmra.mxu0 %v1828
          %v2605 = vpop.f32.mrf.mxu0
          %v2606 = vadd.f32 %v2557, %v2605
          %v2607 = vpop.f32.mrf.mxu0
          %v2608 = vadd.f32 %v2559, %v2607
          %2609 = vmatmul.bf16.gmra.mxu0 %v1832
          %v2610 = vpop.f32.mrf.mxu0
          %v2611 = vadd.f32 %v2562, %v2610
          %v2612 = vpop.f32.mrf.mxu0
          %v2613 = vadd.f32 %v2564, %v2612
          %2614 = vdwg.mxu0
          %v2615 = vmax.f32 %v2380, 0.0
          %v2616 = vmax.f32 %v2576, 0.0
          %v2617 = vmax.f32 %v2382, 0.0
          %v2618 = vmax.f32 %v2578, 0.0
          %v2619 = vmax.f32 %v2385, 0.0
          %v2620 = vmax.f32 %v2581, 0.0
          %v2621 = vmax.f32 %v2387, 0.0
          %v2622 = vmax.f32 %v2583, 0.0
          %v2623 = vmax.f32 %v2390, 0.0
          %v2624 = vmax.f32 %v2586, 0.0
          %v2625 = vmax.f32 %v2392, 0.0
          %v2626 = vmax.f32 %v2588, 0.0
          %v2627 = vmax.f32 %v2395, 0.0
          %v2628 = vmax.f32 %v2591, 0.0
          %v2629 = vmax.f32 %v2397, 0.0
          %v2630 = vmax.f32 %v2593, 0.0
          %v2631 = vmax.f32 %v2400, 0.0
          %v2632 = vmax.f32 %v2596, 0.0
          %v2633 = vmax.f32 %v2402, 0.0
          %v2634 = vmax.f32 %v2598, 0.0
          %v2635 = vmax.f32 %v2405, 0.0
          %v2636 = vmax.f32 %v2601, 0.0
          %v2637 = vmax.f32 %v2407, 0.0
          %v2638 = vmax.f32 %v2603, 0.0
          %v2639 = vmax.f32 %v2410, 0.0
          %v2640 = vmax.f32 %v2606, 0.0
          %v2641 = vmax.f32 %v2412, 0.0
          %v2642 = vmax.f32 %v2608, 0.0
          %v2643 = vmax.f32 %v2415, 0.0
          %v2644 = vmax.f32 %v2611, 0.0
          %v2645 = vmax.f32 %v2417, 0.0
          %v2646 = vmax.f32 %v2613, 0.0
          %v2647 = vpack.c.bf16 %v2617, %v2615
          %v2648 = vpack.c.bf16 %v2618, %v2616
          %v2649 = vpack.c.bf16 %v2621, %v2619
          %v2650 = vpack.c.bf16 %v2622, %v2620
          %v2651 = vpack.c.bf16 %v2625, %v2623
          %v2652 = vpack.c.bf16 %v2626, %v2624
          %v2653 = vpack.c.bf16 %v2629, %v2627
          %v2654 = vpack.c.bf16 %v2630, %v2628
          %v2655 = vpack.c.bf16 %v2633, %v2631
          %v2656 = vpack.c.bf16 %v2634, %v2632
          %v2657 = vpack.c.bf16 %v2637, %v2635
          %v2658 = vpack.c.bf16 %v2638, %v2636
          %v2659 = vpack.c.bf16 %v2641, %v2639
          %v2660 = vpack.c.bf16 %v2642, %v2640
          %v2661 = vpack.c.bf16 %v2645, %v2643
          %v2662 = vpack.c.bf16 %v2646, %v2644
          %v2663 = vld [vmem:[#allocation11] sm:$0xf]
          %v2664 = vld [vmem:[#allocation11 + $0x4] sm:$0xf]
          %v2665 = vld [vmem:[#allocation11 + $0x8] sm:$0xf]
          %v2666 = vld [vmem:[#allocation11 + $0xc] sm:$0xf]
          %v2667 = vld [vmem:[#allocation11 + $0x10] sm:$0xf]
          %v2668 = vld [vmem:[#allocation11 + $0x14] sm:$0xf]
          %v2669 = vld [vmem:[#allocation11 + $0x18] sm:$0xf]
          %v2670 = vld [vmem:[#allocation11 + $0x1c] sm:$0xf]
          %v2671 = vld [vmem:[#allocation11 + $0x20] sm:$0xf]
          %v2672 = vld [vmem:[#allocation11 + $0x24] sm:$0xf]
          %v2673 = vld [vmem:[#allocation11 + $0x28] sm:$0xf]
          %v2674 = vld [vmem:[#allocation11 + $0x2c] sm:$0xf]
          %v2675 = vld [vmem:[#allocation11 + $0x30] sm:$0xf]
          %v2676 = vld [vmem:[#allocation11 + $0x34] sm:$0xf]
          %v2677 = vld [vmem:[#allocation11 + $0x38] sm:$0xf]
          %v2678 = vld [vmem:[#allocation11 + $0x3c] sm:$0xf]
          %v2679 = vld [vmem:[#allocation11 + $0x40] sm:$0xf]
          %v2680 = vld [vmem:[#allocation11 + $0x44] sm:$0xf]
          %v2681 = vld [vmem:[#allocation11 + $0x48] sm:$0xf]
          %v2682 = vld [vmem:[#allocation11 + $0x4c] sm:$0xf]
          %v2683 = vld [vmem:[#allocation11 + $0x50] sm:$0xf]
          %v2684 = vld [vmem:[#allocation11 + $0x54] sm:$0xf]
          %v2685 = vld [vmem:[#allocation11 + $0x58] sm:$0xf]
          %v2686 = vld [vmem:[#allocation11 + $0x5c] sm:$0xf]
          %v2687 = vld [vmem:[#allocation11 + $0x60] sm:$0xf]
          %v2688 = vld [vmem:[#allocation11 + $0x64] sm:$0xf]
          %v2689 = vld [vmem:[#allocation11 + $0x68] sm:$0xf]
          %v2690 = vld [vmem:[#allocation11 + $0x6c] sm:$0xf]
          %v2691 = vld [vmem:[#allocation11 + $0x70] sm:$0xf]
          %v2692 = vld [vmem:[#allocation11 + $0x74] sm:$0xf]
          %v2693 = vld [vmem:[#allocation11 + $0x78] sm:$0xf]
          %v2694 = vld [vmem:[#allocation11 + $0x7c] sm:$0xf]
          %v2695 = vld [vmem:[%s6] sm:$0x1]
          %v2697 = vperm.slane %v2695, 0
          %v2731 = vunpack.c.l.b16 %v2663
          %v2732 = vunpack.c.l.b16 %v2664
          %v2733 = vunpack.c.l.b16 %v2665
          %v2734 = vunpack.c.l.b16 %v2666
          %v2735 = vunpack.c.l.b16 %v2667
          %v2736 = vunpack.c.l.b16 %v2668
          %v2737 = vunpack.c.l.b16 %v2669
          %v2738 = vunpack.c.l.b16 %v2670
          %v2739 = vunpack.c.l.b16 %v2671
          %v2740 = vunpack.c.l.b16 %v2672
          %v2741 = vunpack.c.l.b16 %v2673
          %v2742 = vunpack.c.l.b16 %v2674
          %v2743 = vunpack.c.l.b16 %v2675
          %v2744 = vunpack.c.l.b16 %v2676
          %v2745 = vunpack.c.l.b16 %v2677
          %v2746 = vunpack.c.l.b16 %v2678
          %v2747 = vunpack.c.l.b16 %v2679
          %v2748 = vunpack.c.l.b16 %v2680
          %v2749 = vunpack.c.l.b16 %v2681
          %v2750 = vunpack.c.l.b16 %v2682
          %v2751 = vunpack.c.l.b16 %v2683
          %v2752 = vunpack.c.l.b16 %v2684
          %v2753 = vunpack.c.l.b16 %v2685
          %v2754 = vunpack.c.l.b16 %v2686
          %v2755 = vunpack.c.l.b16 %v2687
          %v2756 = vunpack.c.l.b16 %v2688
          %v2757 = vunpack.c.l.b16 %v2689
          %v2758 = vunpack.c.l.b16 %v2690
          %v2759 = vunpack.c.l.b16 %v2691
          %v2760 = vunpack.c.l.b16 %v2692
          %v2761 = vunpack.c.l.b16 %v2693
          %v2762 = vunpack.c.l.b16 %v2694
          %v2763 = vpack.c.b16 %v2732, %v2731
          %v2764 = vpack.c.b16 %v2734, %v2733
          %v2765 = vpack.c.b16 %v2736, %v2735
          %v2766 = vpack.c.b16 %v2738, %v2737
          %v2767 = vpack.c.b16 %v2740, %v2739
          %v2768 = vpack.c.b16 %v2742, %v2741
          %v2769 = vpack.c.b16 %v2744, %v2743
          %v2770 = vpack.c.b16 %v2746, %v2745
          %v2771 = vpack.c.b16 %v2748, %v2747
          %v2772 = vpack.c.b16 %v2750, %v2749
          %v2773 = vpack.c.b16 %v2752, %v2751
          %v2774 = vpack.c.b16 %v2754, %v2753
          %v2775 = vpack.c.b16 %v2756, %v2755
          %v2776 = vpack.c.b16 %v2758, %v2757
          %v2777 = vpack.c.b16 %v2760, %v2759
          %v2778 = vpack.c.b16 %v2762, %v2761
          %2795 = vmatpush.bf16.msra.mxu0 %v2770
          %2796 = vmatpush.bf16.msra.mxu0 %v2769
          %2797 = vmatpush.bf16.msra.mxu0 %v2768
          %2798 = vmatpush.bf16.msra.mxu0 %v2767
          %2799 = vmatpush.bf16.msra.mxu0 %v2766
          %2800 = vmatpush.bf16.msra.mxu0 %v2765
          %2801 = vmatpush.bf16.msra.mxu0 %v2764
          %2802 = vmatpush.bf16.msra.mxu0 %v2763
          %2803 = vmatmul.bf16.gmra.mxu0 %v2647
          %v2804 = vpop.f32.mrf.mxu0
          %v2805 = vadd.f32 %v2697, %v2804
          %v2806 = vpop.f32.mrf.mxu0
          %v2807 = vadd.f32 %v2697, %v2806
          %2808 = vmatmul.bf16.gmra.mxu0 %v2649
          %v2809 = vpop.f32.mrf.mxu0
          %v2810 = vadd.f32 %v2697, %v2809
          %v2811 = vpop.f32.mrf.mxu0
          %v2812 = vadd.f32 %v2697, %v2811
          %2813 = vmatmul.bf16.gmra.mxu0 %v2651
          %v2814 = vpop.f32.mrf.mxu0
          %v2815 = vadd.f32 %v2697, %v2814
          %v2816 = vpop.f32.mrf.mxu0
          %v2817 = vadd.f32 %v2697, %v2816
          %2818 = vmatmul.bf16.gmra.mxu0 %v2653
          %v2819 = vpop.f32.mrf.mxu0
          %v2820 = vadd.f32 %v2697, %v2819
          %v2821 = vpop.f32.mrf.mxu0
          %v2822 = vadd.f32 %v2697, %v2821
          %2823 = vmatmul.bf16.gmra.mxu0 %v2655
          %v2824 = vpop.f32.mrf.mxu0
          %v2825 = vadd.f32 %v2697, %v2824
          %v2826 = vpop.f32.mrf.mxu0
          %v2827 = vadd.f32 %v2697, %v2826
          %2828 = vmatmul.bf16.gmra.mxu0 %v2657
          %v2829 = vpop.f32.mrf.mxu0
          %v2830 = vadd.f32 %v2697, %v2829
          %v2831 = vpop.f32.mrf.mxu0
          %v2832 = vadd.f32 %v2697, %v2831
          %2833 = vmatmul.bf16.gmra.mxu0 %v2659
          %v2834 = vpop.f32.mrf.mxu0
          %v2835 = vadd.f32 %v2697, %v2834
          %v2836 = vpop.f32.mrf.mxu0
          %v2837 = vadd.f32 %v2697, %v2836
          %2838 = vmatmul.bf16.gmra.mxu0 %v2661
          %v2839 = vpop.f32.mrf.mxu0
          %v2840 = vadd.f32 %v2697, %v2839
          %v2841 = vpop.f32.mrf.mxu0
          %v2842 = vadd.f32 %v2697, %v2841
          %2843 = vdwg.mxu0
          %2844 = vmatpush.bf16.msra.mxu0 %v2778
          %2845 = vmatpush.bf16.msra.mxu0 %v2777
          %2846 = vmatpush.bf16.msra.mxu0 %v2776
          %2847 = vmatpush.bf16.msra.mxu0 %v2775
          %2848 = vmatpush.bf16.msra.mxu0 %v2774
          %2849 = vmatpush.bf16.msra.mxu0 %v2773
          %2850 = vmatpush.bf16.msra.mxu0 %v2772
          %2851 = vmatpush.bf16.msra.mxu0 %v2771
          %2852 = vmatmul.bf16.gmra.mxu0 %v2648
          %v2853 = vpop.f32.mrf.mxu0
          %v2854 = vadd.f32 %v2805, %v2853
          %v2855 = vpop.f32.mrf.mxu0
          %v2856 = vadd.f32 %v2807, %v2855
          %2857 = vmatmul.bf16.gmra.mxu0 %v2650
          %v2858 = vpop.f32.mrf.mxu0
          %v2859 = vadd.f32 %v2810, %v2858
          %v2860 = vpop.f32.mrf.mxu0
          %v2861 = vadd.f32 %v2812, %v2860
          %2862 = vmatmul.bf16.gmra.mxu0 %v2652
          %v2863 = vpop.f32.mrf.mxu0
          %v2864 = vadd.f32 %v2815, %v2863
          %v2865 = vpop.f32.mrf.mxu0
          %v2866 = vadd.f32 %v2817, %v2865
          %2867 = vmatmul.bf16.gmra.mxu0 %v2654
          %v2868 = vpop.f32.mrf.mxu0
          %v2869 = vadd.f32 %v2820, %v2868
          %v2870 = vpop.f32.mrf.mxu0
          %v2871 = vadd.f32 %v2822, %v2870
          %2872 = vmatmul.bf16.gmra.mxu0 %v2656
          %v2873 = vpop.f32.mrf.mxu0
          %v2874 = vadd.f32 %v2825, %v2873
          %v2875 = vpop.f32.mrf.mxu0
          %v2876 = vadd.f32 %v2827, %v2875
          %2877 = vmatmul.bf16.gmra.mxu0 %v2658
          %v2878 = vpop.f32.mrf.mxu0
          %v2879 = vadd.f32 %v2830, %v2878
          %v2880 = vpop.f32.mrf.mxu0
          %v2881 = vadd.f32 %v2832, %v2880
          %2882 = vmatmul.bf16.gmra.mxu0 %v2660
          %v2883 = vpop.f32.mrf.mxu0
          %v2884 = vadd.f32 %v2835, %v2883
          %v2885 = vpop.f32.mrf.mxu0
          %v2886 = vadd.f32 %v2837, %v2885
          %2887 = vmatmul.bf16.gmra.mxu0 %v2662
          %v2888 = vpop.f32.mrf.mxu0
          %v2889 = vadd.f32 %v2840, %v2888
          %v2890 = vpop.f32.mrf.mxu0
          %v2891 = vadd.f32 %v2842, %v2890
          %2892 = vdwg.mxu0
          %v2893 = vmax.f32 %v2854, 0.0
          %v2894 = vmax.f32 %v2856, 0.0
          %v2895 = vmax.f32 %v2859, 0.0
          %v2896 = vmax.f32 %v2861, 0.0
          %v2897 = vmax.f32 %v2864, 0.0
          %v2898 = vmax.f32 %v2866, 0.0
          %v2899 = vmax.f32 %v2869, 0.0
          %v2900 = vmax.f32 %v2871, 0.0
          %v2901 = vmax.f32 %v2874, 0.0
          %v2902 = vmax.f32 %v2876, 0.0
          %v2903 = vmax.f32 %v2879, 0.0
          %v2904 = vmax.f32 %v2881, 0.0
          %v2905 = vmax.f32 %v2884, 0.0
          %v2906 = vmax.f32 %v2886, 0.0
          %v2907 = vmax.f32 %v2889, 0.0
          %v2908 = vmax.f32 %v2891, 0.0
          %v2909 = vpack.c.bf16 %v2894, %v2893
          %v2910 = vpack.c.bf16 %v2896, %v2895
          %v2911 = vpack.c.bf16 %v2898, %v2897
          %v2912 = vpack.c.bf16 %v2900, %v2899
          %v2913 = vpack.c.bf16 %v2902, %v2901
          %v2914 = vpack.c.bf16 %v2904, %v2903
          %v2915 = vpack.c.bf16 %v2906, %v2905
          %v2916 = vpack.c.bf16 %v2908, %v2907
          %v2917 = vld [vmem:[#allocation12] sm:$0xf]
          %v2918 = vld [vmem:[#allocation12 + $0x4] sm:$0xf]
          %v2919 = vld [vmem:[#allocation12 + $0x8] sm:$0xf]
          %v2920 = vld [vmem:[#allocation12 + $0xc] sm:$0xf]
          %v2921 = vld [vmem:[#allocation12 + $0x10] sm:$0xf]
          %v2922 = vld [vmem:[#allocation12 + $0x14] sm:$0xf]
          %v2923 = vld [vmem:[#allocation12 + $0x18] sm:$0xf]
          %v2924 = vld [vmem:[#allocation12 + $0x1c] sm:$0xf]
          %v2925 = vld [vmem:[#allocation12 + $0x20] sm:$0xf]
          %v2926 = vld [vmem:[#allocation12 + $0x24] sm:$0xf]
          %v2927 = vld [vmem:[#allocation12 + $0x28] sm:$0xf]
          %v2928 = vld [vmem:[#allocation12 + $0x2c] sm:$0xf]
          %v2929 = vld [vmem:[#allocation12 + $0x30] sm:$0xf]
          %v2930 = vld [vmem:[#allocation12 + $0x34] sm:$0xf]
          %v2931 = vld [vmem:[#allocation12 + $0x38] sm:$0xf]
          %v2932 = vld [vmem:[#allocation12 + $0x3c] sm:$0xf]
          %v2933 = vld [vmem:[%s8] sm:$0x1]
          %v2935 = vperm.slane %v2933, 0
          %v2953 = vunpack.c.l.b16 %v2917
          %v2954 = vunpack.c.l.b16 %v2918
          %v2955 = vunpack.c.l.b16 %v2919
          %v2956 = vunpack.c.l.b16 %v2920
          %v2957 = vunpack.c.l.b16 %v2921
          %v2958 = vunpack.c.l.b16 %v2922
          %v2959 = vunpack.c.l.b16 %v2923
          %v2960 = vunpack.c.l.b16 %v2924
          %v2961 = vunpack.c.l.b16 %v2925
          %v2962 = vunpack.c.l.b16 %v2926
          %v2963 = vunpack.c.l.b16 %v2927
          %v2964 = vunpack.c.l.b16 %v2928
          %v2965 = vunpack.c.l.b16 %v2929
          %v2966 = vunpack.c.l.b16 %v2930
          %v2967 = vunpack.c.l.b16 %v2931
          %v2968 = vunpack.c.l.b16 %v2932
          %v2969 = vpack.c.b16 %v2954, %v2953
          %v2970 = vpack.c.b16 %v2956, %v2955
          %v2971 = vpack.c.b16 %v2958, %v2957
          %v2972 = vpack.c.b16 %v2960, %v2959
          %v2973 = vpack.c.b16 %v2962, %v2961
          %v2974 = vpack.c.b16 %v2964, %v2963
          %v2975 = vpack.c.b16 %v2966, %v2965
          %v2976 = vpack.c.b16 %v2968, %v2967
          %2985 = vmatpush.bf16.msra.mxu0 %v2976
          %2986 = vmatpush.bf16.msra.mxu0 %v2975
          %2987 = vmatpush.bf16.msra.mxu0 %v2974
          %2988 = vmatpush.bf16.msra.mxu0 %v2973
          %2989 = vmatpush.bf16.msra.mxu0 %v2972
          %2990 = vmatpush.bf16.msra.mxu0 %v2971
          %2991 = vmatpush.bf16.msra.mxu0 %v2970
          %2992 = vmatpush.bf16.msra.mxu0 %v2969
          %2993 = vmatmul.bf16.gmra.mxu0 %v2909
          %v2994 = vpop.f32.mrf.mxu0
          %v2995 = vadd.f32 %v2935, %v2994
          %v2996 = vpop.f32.mrf.mxu0
          %v2997 = vadd.f32 %v2935, %v2996
          %2998 = vmatmul.bf16.gmra.mxu0 %v2910
          %v2999 = vpop.f32.mrf.mxu0
          %v3000 = vadd.f32 %v2935, %v2999
          %v3001 = vpop.f32.mrf.mxu0
          %v3002 = vadd.f32 %v2935, %v3001
          %3003 = vmatmul.bf16.gmra.mxu0 %v2911
          %v3004 = vpop.f32.mrf.mxu0
          %v3005 = vadd.f32 %v2935, %v3004
          %v3006 = vpop.f32.mrf.mxu0
          %v3007 = vadd.f32 %v2935, %v3006
          %3008 = vmatmul.bf16.gmra.mxu0 %v2912
          %v3009 = vpop.f32.mrf.mxu0
          %v3010 = vadd.f32 %v2935, %v3009
          %v3011 = vpop.f32.mrf.mxu0
          %v3012 = vadd.f32 %v2935, %v3011
          %3013 = vmatmul.bf16.gmra.mxu0 %v2913
          %v3014 = vpop.f32.mrf.mxu0
          %v3015 = vadd.f32 %v2935, %v3014
          %v3016 = vpop.f32.mrf.mxu0
          %v3017 = vadd.f32 %v2935, %v3016
          %3018 = vmatmul.bf16.gmra.mxu0 %v2914
          %v3019 = vpop.f32.mrf.mxu0
          %v3020 = vadd.f32 %v2935, %v3019
          %v3021 = vpop.f32.mrf.mxu0
          %v3022 = vadd.f32 %v2935, %v3021
          %3023 = vmatmul.bf16.gmra.mxu0 %v2915
          %v3024 = vpop.f32.mrf.mxu0
          %v3025 = vadd.f32 %v2935, %v3024
          %v3026 = vpop.f32.mrf.mxu0
          %v3027 = vadd.f32 %v2935, %v3026
          %3028 = vmatmul.bf16.gmra.mxu0 %v2916
          %v3029 = vpop.f32.mrf.mxu0
          %v3030 = vadd.f32 %v2935, %v3029
          %v3031 = vpop.f32.mrf.mxu0
          %v3032 = vadd.f32 %v2935, %v3031
          %3033 = vdwg.mxu0
          %3034 = vst [vmem:[%s459] sm:$0xff] %v2995
          %3035 = vst [vmem:[%s459 + $0x8] sm:$0xff] %v2997
          %3036 = vst [vmem:[%s459 + $0x10] sm:$0xff] %v3000
          %3037 = vst [vmem:[%s459 + $0x18] sm:$0xff] %v3002
          %3038 = vst [vmem:[%s459 + $0x20] sm:$0xff] %v3005
          %3039 = vst [vmem:[%s459 + $0x28] sm:$0xff] %v3007
          %3040 = vst [vmem:[%s459 + $0x30] sm:$0xff] %v3010
          %3041 = vst [vmem:[%s459 + $0x38] sm:$0xff] %v3012
          %3042 = vst [vmem:[%s459 + $0x40] sm:$0xff] %v3015
          %3043 = vst [vmem:[%s459 + $0x48] sm:$0xff] %v3017
          %3044 = vst [vmem:[%s459 + $0x50] sm:$0xff] %v3020
          %3045 = vst [vmem:[%s459 + $0x58] sm:$0xff] %v3022
          %3046 = vst [vmem:[%s459 + $0x60] sm:$0xff] %v3025
          %3047 = vst [vmem:[%s459 + $0x68] sm:$0xff] %v3027
          %3048 = vst [vmem:[%s459 + $0x70] sm:$0xff] %v3030
          %3049 = vst [vmem:[%s459 + $0x78] sm:$0xff] %v3032
        $region88: #{tpu_custom_call.1} parent=55 // pred_fallthru
          _
        %s3050 = sand.u32 %s250, 1
        %s3051 = scalar_lea.sflag [#allocation5], %s3050
        %s3052 = sand.u32 %s250, 1
        %s3053 = smul.addr %s3052, 128
        %s3054 = scalar_lea.vmem [#allocation14], %s3053
        // Predicated region
        $region89: #{tpu_custom_call.1} parent=55 // pred_check
          %p3055 = pneg %p260
        $region90: #{tpu_custom_call.1} parent=55 // pred_check_branch
          %3057 = sbr.rel (%p3055) target = $region92
        $region91: #{tpu_custom_call.1} parent=55 // pred_region
          %s3058 = smul.u32 16, %s33
          %3060 = vsyncadd %s3051, 0
          %s3061 = smul.addr %s3058, 8
          %s3062 = scalar_lea.hbm %s9, %s3061
          %s3063 = sshll.u32 %s3054, 4
          %s3064 = int_to_ptr.vmem [resolvable:$true] %s3063
          %s3065 = sshll.u32 %s3062, 4
          %s3066 = int_to_ptr.hbm [resolvable:$true] %s3065
          %3071 = dma.vmem_to_hbm [thread:$0]  %s3064, 2048, %s3066, %s3051, 128, 128, 8
        $region92: #{tpu_custom_call.1} parent=55 // pred_fallthru
          _
      $region56: #{tpu_custom_call.1} parent=5 // pred_fallthru
        _
      %p3072 = scmp.le.s32.totalorder 2, %s24
      // Predicated region
      $region93: #{tpu_custom_call.1} parent=5 // pred_check
        %p3073 = pneg %p3072
      $region94: #{tpu_custom_call.1} parent=5 // pred_check_branch
        %3075 = sbr.rel (%p3073) target = $region96
      $region95: #{tpu_custom_call.1} parent=5 // pred_region
        %s3076 = ssub.s32 %s24, 2
        // Predicated region
        $region97: #{tpu_custom_call.1} parent=95 // pred_check
          %p3077 = pneg %p266
        $region98: #{tpu_custom_call.1} parent=95 // pred_check_branch
          %3079 = sbr.rel (%p3077) target = $region100
        $region99: #{tpu_custom_call.1} parent=95 // pred_region
          %s3080 = sand.u32 %s251, 1
          %s3081 = scalar_lea.sflag [#allocation5], %s3080
          %s3082 = sand.u32 %s251, 1
          %s3083 = smul.addr %s3082, 128
          %s3084 = scalar_lea.vmem [#allocation14], %s3083
          %3086 = dma.done %s3081, 2048
        $region100: #{tpu_custom_call.1} parent=95 // pred_fallthru
          _
      $region96: #{tpu_custom_call.1} parent=5 // pred_fallthru
        _
    $region6: #{tpu_custom_call.1} parent=1 // loop_footer
      %s28 = sadd.s32 1, %s24
    $region7: #{tpu_custom_call.1} parent=1 // loop_footer_branch
      %23 = sbr.rel target = $region3
    $region8: #{tpu_custom_call.1} parent=1 // loop_exit
      _
    %3087 = vsyncpa [#allocation4], 1
    %s3088 = scalar_lea.sflag [#allocation4], 1
    %3089 = vsyncpa %s3088, 1
    %3090 = vsyncpa [#allocation7], 1
    %3091 = vsyncpa [#allocation10], 1
    %3092 = vsyncpa [#allocation13], 1
    %3093 = vsyncpa [#allocation5], 1
    %s3094 = scalar_lea.sflag [#allocation5], 1
    %3095 = vsyncpa %s3094, 1

</llo_original>
